<compile_context>
chip_gen: v7x
topology: tpu7x:2x2x1
jax: 0.10.0
libtpu: 0.0.40
codegen_flags: <defaults>
</compile_context>

<pallas_src>
import functools

import jax
import jax.numpy as jnp
from jax.experimental import pallas as pl
from jax.experimental.pallas import tpu as pltpu


def _round_up(n, m):
    return ((n + m - 1) // m) * m


def _vae_kernel(x_ref, w1_ref, b1_ref, wmulv_ref, bmulv_ref,
                w2p_ref, b2_ref, w3_ref, b3_ref,
                xrec_ref, musig_ref, *, z_dim):
    # ---- encoder ----
    x = x_ref[...]                                            # (TB, D) f32
    h = jnp.dot(x.astype(jnp.bfloat16), w1_ref[...],
                preferred_element_type=jnp.float32)           # bf16 MXU, f32 acc
    h = jnp.maximum(h + b1_ref[...], 0.0)

    # fused mu/logvar projection -> lane-dense (TB, 2Z)
    proj = jnp.dot(h.astype(jnp.bfloat16), wmulv_ref[...],
                   preferred_element_type=jnp.float32) + bmulv_ref[...]

    # first Z lanes: mu (identity); last Z lanes: sigma = exp(0.5 * logvar)
    col = jax.lax.broadcasted_iota(jnp.int32, proj.shape, dimension=1)
    musig = jnp.where(col < z_dim, proj, jnp.exp(0.5 * proj))

    # ---- decoder ----
    # z = mu (deterministic). W2 is zero-padded on the logvar rows, so feeding the full
    # lane-dense `proj` (K = 2Z) is exactly mu @ W2 — no narrow 64-lane slice needed.
    h2 = jnp.dot(proj.astype(jnp.bfloat16), w2p_ref[...],
                 preferred_element_type=jnp.float32)
    h2 = jnp.maximum(h2 + b2_ref[...], 0.0)

    logits = jnp.dot(h2.astype(jnp.bfloat16), w3_ref[...],
                     preferred_element_type=jnp.float32) + b3_ref[...]
    x_rec = jax.nn.sigmoid(logits)

    xrec_ref[...] = x_rec.astype(xrec_ref.dtype)
    musig_ref[...] = musig.astype(musig_ref.dtype)


def simple_autoencoder_forward(x_nchw, params):
    """x_nchw: (B, C, H, W) float32. Returns (x_rec_nchw, mu, sigma)."""
    B, C, H, W = x_nchw.shape
    D = C * H * W
    x_flat = x_nchw.reshape(B, D)

    (w1, b1, wmu, bmu, wlv, blv, w2, b2, w3, b3) = params
    Hd = w1.shape[1]
    Z = wmu.shape[1]
    Z2 = 2 * Z

    # ---- one-shot parameter prep (outside the kernel) ----
    w1_bf = w1.astype(jnp.bfloat16)                                        # (D, Hd)
    wmulv = jnp.concatenate([wmu, wlv], axis=1).astype(jnp.bfloat16)       # (Hd, 2Z)
    bmulv = jnp.concatenate([bmu, blv], axis=1)                            # (1, 2Z) f32
    w2p = jnp.concatenate([w2, jnp.zeros_like(w2)], axis=0).astype(jnp.bfloat16)  # (2Z, Hd)
    w3_bf = w3.astype(jnp.bfloat16)                                        # (Hd, D)

    # ---- batch tiling: weights resident, activations pipelined over the grid ----
    TILE_B = min(128, _round_up(B, 8))
    B_pad = _round_up(B, TILE_B)
    if B_pad != B:
        x_flat = jnp.pad(x_flat, ((0, B_pad - B), (0, 0)))
    n_tiles = B_pad // TILE_B

    const = lambda i: (0, 0)   # weights/biases: same block every step -> no re-DMA

    flops = 2 * B_pad * (D * Hd + Hd * Z2 + Z2 * Hd + Hd * D)
    bytes_accessed = (
        x_flat.size * 4
        + (w1_bf.size + wmulv.size + w2p.size + w3_bf.size) * 2
        + (b1.size + bmulv.size + b2.size + b3.size) * 4
        + B_pad * D * 4 + B_pad * Z2 * 4)

    xrec_flat, musig = pl.pallas_call(
        functools.partial(_vae_kernel, z_dim=Z),
        out_shape=(
            jax.ShapeDtypeStruct((B_pad, D), jnp.float32),
            jax.ShapeDtypeStruct((B_pad, Z2), jnp.float32),
        ),
        grid=(n_tiles,),
        in_specs=[
            pl.BlockSpec((TILE_B, D), lambda i: (i, 0)),   # x tile (double-buffered)
            pl.BlockSpec((D, Hd), const),                  # W1   (resident)
            pl.BlockSpec((1, Hd), const),                  # b1
            pl.BlockSpec((Hd, Z2), const),                 # [Wmu|Wlv]
            pl.BlockSpec((1, Z2), const),                  # [bmu|blv]
            pl.BlockSpec((Z2, Hd), const),                 # W2 (zero-padded rows)
            pl.BlockSpec((1, Hd), const),                  # b2
            pl.BlockSpec((Hd, D), const),                  # W3
            pl.BlockSpec((1, D), const),                   # b3
        ],
        out_specs=(
            pl.BlockSpec((TILE_B, D), lambda i: (i, 0)),
            pl.BlockSpec((TILE_B, Z2), lambda i: (i, 0)),
        ),
        compiler_params=pltpu.CompilerParams(
            dimension_semantics=("parallel",)),            # shards batch across v7x's 2 TCs
        cost_estimate=pl.CostEstimate(
            flops=flops,
            transcendentals=B_pad * (Z + D),
            bytes_accessed=bytes_accessed),
    )(x_flat, w1_bf, b1, wmulv, bmulv, w2p, b2, w3_bf, b3)

    x_rec = xrec_flat[:B].reshape(B, C, H, W)
    mu = musig[:B, :Z]
    sigma = musig[:B, Z:]
    return x_rec, mu, sigma


def init_params(key, d_in, d_hidden, d_latent):
    ks = jax.random.split(key, 5)
    scale1 = 1.0 / jnp.sqrt(d_in)
    scaleh = 1.0 / jnp.sqrt(d_hidden)
    scalez = 1.0 / jnp.sqrt(d_latent)
    w1 = jax.random.normal(ks[0], (d_in, d_hidden), jnp.float32) * scale1
    b1 = jnp.zeros((1, d_hidden), jnp.float32)
    wmu = jax.random.normal(ks[1], (d_hidden, d_latent), jnp.float32) * scaleh
    bmu = jnp.zeros((1, d_latent), jnp.float32)
    wlv = jax.random.normal(ks[2], (d_hidden, d_latent), jnp.float32) * scaleh
    blv = jnp.zeros((1, d_latent), jnp.float32)
    w2 = jax.random.normal(ks[3], (d_latent, d_hidden), jnp.float32) * scalez
    b2 = jnp.zeros((1, d_hidden), jnp.float32)
    w3 = jax.random.normal(ks[4], (d_hidden, d_in), jnp.float32) * scaleh
    b3 = jnp.zeros((1, d_in), jnp.float32)
    return (w1, b1, wmu, bmu, wlv, blv, w2, b2, w3, b3)


if __name__ == "__main__":
    key = jax.random.PRNGKey(0)
    k_x, k_p = jax.random.split(key)

    B, C, H, W = 2, 4, 16, 16        # input image (NCHW)
    D_IN = C * H * W                 # 1024
    D_HIDDEN = 128
    D_LATENT = 64                    # 2*Z = 128 -> lane-dense fused projection/output

    x = jax.random.normal(k_x, (B, C, H, W), jnp.float32)
    params = init_params(k_p, D_IN, D_HIDDEN, D_LATENT)

    fwd = jax.jit(simple_autoencoder_forward)
    x_rec, mu, sigma = fwd(x, params)
    jax.block_until_ready((x_rec, mu, sigma))

    assert x_rec.shape == (B, C, H, W)
    assert mu.shape == (B, D_LATENT)
    assert sigma.shape == (B, D_LATENT)
    assert bool(jnp.all(jnp.isfinite(x_rec)))
    assert bool(jnp.all(sigma > 0))

    print("KERNEL_OK")
</pallas_src>

<mosaic_0001>
module attributes {stable_mosaic.version = 11 : i64} {
  func.func @_vae_kernel(%arg0: i32, %arg1: memref<8x1024xf32, #tpu.memory_space<vmem>>, %arg2: memref<1024x128xbf16, #tpu.memory_space<vmem>>, %arg3: memref<1x128xf32, #tpu.memory_space<vmem>>, %arg4: memref<128x128xbf16, #tpu.memory_space<vmem>>, %arg5: memref<1x128xf32, #tpu.memory_space<vmem>>, %arg6: memref<128x128xbf16, #tpu.memory_space<vmem>>, %arg7: memref<1x128xf32, #tpu.memory_space<vmem>>, %arg8: memref<128x1024xbf16, #tpu.memory_space<vmem>>, %arg9: memref<1x1024xf32, #tpu.memory_space<vmem>>, %arg10: memref<8x1024xf32, #tpu.memory_space<vmem>>, %arg11: memref<8x128xf32, #tpu.memory_space<vmem>>) attributes {dimension_semantics = [#tpu.dimension_semantics<parallel>], iteration_bounds = array<i64: 1>, scalar_prefetch = 0 : i64, scratch_operands = 0 : i64, tpu.core_type = #tpu.core_type<tc>, window_params = [{transform_indices = @transform_0, window_bounds = array<i64: 8, 1024>}, {pipeline_mode = #tpu.pipeline_mode<synchronous>, transform_indices = @transform_1, window_bounds = array<i64: 1024, 128>}, {pipeline_mode = #tpu.pipeline_mode<synchronous>, transform_indices = @transform_2, window_bounds = array<i64: 1, 128>}, {pipeline_mode = #tpu.pipeline_mode<synchronous>, transform_indices = @transform_3, window_bounds = array<i64: 128, 128>}, {pipeline_mode = #tpu.pipeline_mode<synchronous>, transform_indices = @transform_4, window_bounds = array<i64: 1, 128>}, {pipeline_mode = #tpu.pipeline_mode<synchronous>, transform_indices = @transform_5, window_bounds = array<i64: 128, 128>}, {pipeline_mode = #tpu.pipeline_mode<synchronous>, transform_indices = @transform_6, window_bounds = array<i64: 1, 128>}, {pipeline_mode = #tpu.pipeline_mode<synchronous>, transform_indices = @transform_7, window_bounds = array<i64: 128, 1024>}, {pipeline_mode = #tpu.pipeline_mode<synchronous>, transform_indices = @transform_8, window_bounds = array<i64: 1, 1024>}, {transform_indices = @transform_9, window_bounds = array<i64: 8, 1024>}, {transform_indices = @transform_10, window_bounds = array<i64: 8, 128>}]} {
    %c0 = arith.constant 0 : index
    %c0_0 = arith.constant 0 : index
    %0 = vector.load %arg1[%c0, %c0_0] : memref<8x1024xf32, #tpu.memory_space<vmem>>, vector<8x1024xf32>
    %1 = arith.truncf %0 : vector<8x1024xf32> to vector<8x1024xbf16>
    %c0_1 = arith.constant 0 : index
    %c0_2 = arith.constant 0 : index
    %2 = vector.load %arg2[%c0_1, %c0_2] : memref<1024x128xbf16, #tpu.memory_space<vmem>>, vector<1024x128xbf16>
    %cst = arith.constant dense<0.000000e+00> : vector<8x128xf32>
    %3 = tpu.matmul %1, %2, %cst {dimension_numbers = #tpu.dot_dimension_numbers<[1], [0], [0], [1], [0, 0, 1, 1], [], []>} : vector<8x1024xbf16>, vector<1024x128xbf16>, vector<8x128xf32> -> vector<8x128xf32>
    %c0_3 = arith.constant 0 : index
    %c0_4 = arith.constant 0 : index
    %4 = vector.load %arg3[%c0_3, %c0_4] : memref<1x128xf32, #tpu.memory_space<vmem>>, vector<1x128xf32>
    %5 = vector.broadcast %4 : vector<1x128xf32> to vector<8x128xf32>
    %6 = arith.addf %3, %5 : vector<8x128xf32>
    %cst_5 = arith.constant 0.000000e+00 : f32
    %7 = vector.broadcast %cst_5 : f32 to vector<8x128xf32>
    %8 = arith.maximumf %6, %7 : vector<8x128xf32>
    %9 = arith.truncf %8 : vector<8x128xf32> to vector<8x128xbf16>
    %c0_6 = arith.constant 0 : index
    %c0_7 = arith.constant 0 : index
    %10 = vector.load %arg4[%c0_6, %c0_7] : memref<128x128xbf16, #tpu.memory_space<vmem>>, vector<128x128xbf16>
    %cst_8 = arith.constant dense<0.000000e+00> : vector<8x128xf32>
    %11 = tpu.matmul %9, %10, %cst_8 {dimension_numbers = #tpu.dot_dimension_numbers<[1], [0], [0], [1], [0, 0, 1, 1], [], []>} : vector<8x128xbf16>, vector<128x128xbf16>, vector<8x128xf32> -> vector<8x128xf32>
    %c0_9 = arith.constant 0 : index
    %c0_10 = arith.constant 0 : index
    %12 = vector.load %arg5[%c0_9, %c0_10] : memref<1x128xf32, #tpu.memory_space<vmem>>, vector<1x128xf32>
    %13 = vector.broadcast %12 : vector<1x128xf32> to vector<8x128xf32>
    %14 = arith.addf %11, %13 : vector<8x128xf32>
    %15 = tpu.iota {dimensions = array<i32: 1>} : vector<8x128xi32>
    %c64_i32 = arith.constant 64 : i32
    %16 = vector.broadcast %c64_i32 : i32 to vector<8x128xi32>
    %17 = arith.cmpi slt, %15, %16 : vector<8x128xi32>
    %cst_11 = arith.constant 5.000000e-01 : f32
    %18 = vector.broadcast %cst_11 : f32 to vector<8x128xf32>
    %19 = arith.mulf %18, %14 : vector<8x128xf32>
    %20 = math.exp %19 : vector<8x128xf32>
    %21 = arith.select %17, %14, %20 : vector<8x128xi1>, vector<8x128xf32>
    %22 = arith.truncf %14 : vector<8x128xf32> to vector<8x128xbf16>
    %c0_12 = arith.constant 0 : index
    %c0_13 = arith.constant 0 : index
    %23 = vector.load %arg6[%c0_12, %c0_13] : memref<128x128xbf16, #tpu.memory_space<vmem>>, vector<128x128xbf16>
    %cst_14 = arith.constant dense<0.000000e+00> : vector<8x128xf32>
    %24 = tpu.matmul %22, %23, %cst_14 {dimension_numbers = #tpu.dot_dimension_numbers<[1], [0], [0], [1], [0, 0, 1, 1], [], []>} : vector<8x128xbf16>, vector<128x128xbf16>, vector<8x128xf32> -> vector<8x128xf32>
    %c0_15 = arith.constant 0 : index
    %c0_16 = arith.constant 0 : index
    %25 = vector.load %arg7[%c0_15, %c0_16] : memref<1x128xf32, #tpu.memory_space<vmem>>, vector<1x128xf32>
    %26 = vector.broadcast %25 : vector<1x128xf32> to vector<8x128xf32>
    %27 = arith.addf %24, %26 : vector<8x128xf32>
    %cst_17 = arith.constant 0.000000e+00 : f32
    %28 = vector.broadcast %cst_17 : f32 to vector<8x128xf32>
    %29 = arith.maximumf %27, %28 : vector<8x128xf32>
    %30 = arith.truncf %29 : vector<8x128xf32> to vector<8x128xbf16>
    %c0_18 = arith.constant 0 : index
    %c0_19 = arith.constant 0 : index
    %31 = vector.load %arg8[%c0_18, %c0_19] : memref<128x1024xbf16, #tpu.memory_space<vmem>>, vector<128x1024xbf16>
    %cst_20 = arith.constant dense<0.000000e+00> : vector<8x1024xf32>
    %32 = tpu.matmul %30, %31, %cst_20 {dimension_numbers = #tpu.dot_dimension_numbers<[1], [0], [0], [1], [0, 0, 1, 1], [], []>} : vector<8x128xbf16>, vector<128x1024xbf16>, vector<8x1024xf32> -> vector<8x1024xf32>
    %c0_21 = arith.constant 0 : index
    %c0_22 = arith.constant 0 : index
    %33 = vector.load %arg9[%c0_21, %c0_22] : memref<1x1024xf32, #tpu.memory_space<vmem>>, vector<1x1024xf32>
    %34 = vector.broadcast %33 : vector<1x1024xf32> to vector<8x1024xf32>
    %35 = arith.addf %32, %34 : vector<8x1024xf32>
    %36 = arith.negf %35 : vector<8x1024xf32>
    %37 = math.exp %36 : vector<8x1024xf32>
    %cst_23 = arith.constant 1.000000e+00 : f32
    %38 = vector.broadcast %cst_23 : f32 to vector<8x1024xf32>
    %39 = arith.addf %38, %37 : vector<8x1024xf32>
    %40 = arith.divf %38, %39 : vector<8x1024xf32>
    %c0_24 = arith.constant 0 : index
    %c0_25 = arith.constant 0 : index
    %41 = vector.load %arg10[%c0_24, %c0_25] : memref<8x1024xf32, #tpu.memory_space<vmem>>, vector<8x1024xf32>
    tpu.vector_store %arg10[%c0_24, %c0_25], %40 {strides = array<i32>} : memref<8x1024xf32, #tpu.memory_space<vmem>>, vector<8x1024xf32>,
    %c0_26 = arith.constant 0 : index
    %c0_27 = arith.constant 0 : index
    %42 = vector.load %arg11[%c0_26, %c0_27] : memref<8x128xf32, #tpu.memory_space<vmem>>, vector<8x128xf32>
    tpu.vector_store %arg11[%c0_26, %c0_27], %21 {strides = array<i32>} : memref<8x128xf32, #tpu.memory_space<vmem>>, vector<8x128xf32>,
    return
  }
  func.func @transform_0(%arg0: i32) -> (i32, i32) {
    %c0_i32 = arith.constant 0 : i32
    %c0_i32_0 = arith.constant 0 : i32
    return %arg0, %c0_i32 : i32, i32
  }
  func.func @transform_1(%arg0: i32) -> (i32, i32) {
    %c0_i32 = arith.constant 0 : i32
    %c0_i32_0 = arith.constant 0 : i32
    %c0_i32_1 = arith.constant 0 : i32
    return %c0_i32, %c0_i32_0 : i32, i32
  }
  func.func @transform_2(%arg0: i32) -> (i32, i32) {
    %c0_i32 = arith.constant 0 : i32
    %c0_i32_0 = arith.constant 0 : i32
    %c0_i32_1 = arith.constant 0 : i32
    return %c0_i32, %c0_i32_0 : i32, i32
  }
  func.func @transform_3(%arg0: i32) -> (i32, i32) {
    %c0_i32 = arith.constant 0 : i32
    %c0_i32_0 = arith.constant 0 : i32
    %c0_i32_1 = arith.constant 0 : i32
    return %c0_i32, %c0_i32_0 : i32, i32
  }
  func.func @transform_4(%arg0: i32) -> (i32, i32) {
    %c0_i32 = arith.constant 0 : i32
    %c0_i32_0 = arith.constant 0 : i32
    %c0_i32_1 = arith.constant 0 : i32
    return %c0_i32, %c0_i32_0 : i32, i32
  }
  func.func @transform_5(%arg0: i32) -> (i32, i32) {
    %c0_i32 = arith.constant 0 : i32
    %c0_i32_0 = arith.constant 0 : i32
    %c0_i32_1 = arith.constant 0 : i32
    return %c0_i32, %c0_i32_0 : i32, i32
  }
  func.func @transform_6(%arg0: i32) -> (i32, i32) {
    %c0_i32 = arith.constant 0 : i32
    %c0_i32_0 = arith.constant 0 : i32
    %c0_i32_1 = arith.constant 0 : i32
    return %c0_i32, %c0_i32_0 : i32, i32
  }
  func.func @transform_7(%arg0: i32) -> (i32, i32) {
    %c0_i32 = arith.constant 0 : i32
    %c0_i32_0 = arith.constant 0 : i32
    %c0_i32_1 = arith.constant 0 : i32
    return %c0_i32, %c0_i32_0 : i32, i32
  }
  func.func @transform_8(%arg0: i32) -> (i32, i32) {
    %c0_i32 = arith.constant 0 : i32
    %c0_i32_0 = arith.constant 0 : i32
    %c0_i32_1 = arith.constant 0 : i32
    return %c0_i32, %c0_i32_0 : i32, i32
  }
  func.func @transform_9(%arg0: i32) -> (i32, i32) {
    %c0_i32 = arith.constant 0 : i32
    %c0_i32_0 = arith.constant 0 : i32
    return %arg0, %c0_i32 : i32, i32
  }
  func.func @transform_10(%arg0: i32) -> (i32, i32) {
    %c0_i32 = arith.constant 0 : i32
    %c0_i32_0 = arith.constant 0 : i32
    return %arg0, %c0_i32 : i32, i32
  }
}

</mosaic_0001>

<llo_original>
// kernel: simple_autoencoder_forward.1
$region0: #{simple_autoencoder_forward.1}
  #allocation0 [shape = 'u32[]', space=smem, size = 0x4, offset = 0x4, fixed_abs, tag = 'smem constant byte address 0x4 - core index']
  #allocation1 [shape = 'u32[144,128]{1,0:T(1,128)}', space=vmem, size = 0x12000, scoped, tag = 'internal scratch']
  %s0 = inlined_call_operand.vmem [shape: f32[8,1024], index: 0, kind: input, shape index: {}]
  %s1 = inlined_call_operand.vmem [shape: bf16[1024,128], index: 1, kind: input, shape index: {}]
  %s2 = inlined_call_operand.vmem [shape: f32[1,128], index: 2, kind: input, shape index: {}]
  %s3 = inlined_call_operand.vmem [shape: bf16[128,128], index: 3, kind: input, shape index: {}]
  %s4 = inlined_call_operand.vmem [shape: f32[1,128], index: 4, kind: input, shape index: {}]
  %s5 = inlined_call_operand.vmem [shape: bf16[128,128], index: 5, kind: input, shape index: {}]
  %s6 = inlined_call_operand.vmem [shape: f32[1,128], index: 6, kind: input, shape index: {}]
  %s7 = inlined_call_operand.vmem [shape: bf16[128,1024], index: 7, kind: input, shape index: {}]
  %s8 = inlined_call_operand.vmem [shape: f32[1,1024], index: 8, kind: input, shape index: {}]
  %s9 = inlined_call_operand.vmem [shape: f32[8,1024], index: 9, kind: output, shape index: {0}]
  %s10 = inlined_call_operand.vmem [shape: f32[8,128], index: 10, kind: output, shape index: {1}]
  %11 = xla_tuple %s9, %s10
  %s12 = sld [smem:[#allocation0]]
  $region54: #{simple_autoencoder_forward.1} parent=0
    _
  %s14 = ssub.s32 1, %s12
  %s15 = scalar_select 0, %s14, %s12
  // Predicated region
  $region2: #{simple_autoencoder_forward.1} parent=0 // pred_check
    _
  $region3: #{simple_autoencoder_forward.1} parent=0 // pred_check_branch
    %17 = sbr.rel (0) target = $region5
  $region4: #{simple_autoencoder_forward.1} parent=0 // pred_region
    _
  $region5: #{simple_autoencoder_forward.1} parent=0 // pred_fallthru
    _
  // Predicated region
  $region6: #{simple_autoencoder_forward.1} parent=0 // pred_check
    _
  $region7: #{simple_autoencoder_forward.1} parent=0 // pred_check_branch
    %19 = sbr.rel (0) target = $region9
  $region8: #{simple_autoencoder_forward.1} parent=0 // pred_region
    _
  $region9: #{simple_autoencoder_forward.1} parent=0 // pred_fallthru
    _
  // Predicated region
  $region10: #{simple_autoencoder_forward.1} parent=0 // pred_check
    _
  $region11: #{simple_autoencoder_forward.1} parent=0 // pred_check_branch
    %21 = sbr.rel (0) target = $region13
  $region12: #{simple_autoencoder_forward.1} parent=0 // pred_region
    _
  $region13: #{simple_autoencoder_forward.1} parent=0 // pred_fallthru
    _
  // Predicated region
  $region14: #{simple_autoencoder_forward.1} parent=0 // pred_check
    _
  $region15: #{simple_autoencoder_forward.1} parent=0 // pred_check_branch
    %23 = sbr.rel (0) target = $region17
  $region16: #{simple_autoencoder_forward.1} parent=0 // pred_region
    _
  $region17: #{simple_autoencoder_forward.1} parent=0 // pred_fallthru
    _
  // Predicated region
  $region18: #{simple_autoencoder_forward.1} parent=0 // pred_check
    _
  $region19: #{simple_autoencoder_forward.1} parent=0 // pred_check_branch
    %25 = sbr.rel (0) target = $region21
  $region20: #{simple_autoencoder_forward.1} parent=0 // pred_region
    _
  $region21: #{simple_autoencoder_forward.1} parent=0 // pred_fallthru
    _
  // Predicated region
  $region22: #{simple_autoencoder_forward.1} parent=0 // pred_check
    _
  $region23: #{simple_autoencoder_forward.1} parent=0 // pred_check_branch
    %27 = sbr.rel (0) target = $region25
  $region24: #{simple_autoencoder_forward.1} parent=0 // pred_region
    _
  $region25: #{simple_autoencoder_forward.1} parent=0 // pred_fallthru
    _
  // Predicated region
  $region26: #{simple_autoencoder_forward.1} parent=0 // pred_check
    _
  $region27: #{simple_autoencoder_forward.1} parent=0 // pred_check_branch
    %29 = sbr.rel (0) target = $region29
  $region28: #{simple_autoencoder_forward.1} parent=0 // pred_region
    _
  $region29: #{simple_autoencoder_forward.1} parent=0 // pred_fallthru
    _
  // Predicated region
  $region30: #{simple_autoencoder_forward.1} parent=0 // pred_check
    _
  $region31: #{simple_autoencoder_forward.1} parent=0 // pred_check_branch
    %31 = sbr.rel (0) target = $region33
  $region32: #{simple_autoencoder_forward.1} parent=0 // pred_region
    _
  $region33: #{simple_autoencoder_forward.1} parent=0 // pred_fallthru
    _
  // Predicated region
  $region34: #{simple_autoencoder_forward.1} parent=0 // pred_check
    _
  $region35: #{simple_autoencoder_forward.1} parent=0 // pred_check_branch
    %33 = sbr.rel (0) target = $region37
  $region36: #{simple_autoencoder_forward.1} parent=0 // pred_region
    _
  $region37: #{simple_autoencoder_forward.1} parent=0 // pred_fallthru
    _
  %v35 = vld [vmem:[%s0] sm:$0xff]
  %v36 = vld [vmem:[%s0 + $0x8] sm:$0xff]
  %v37 = vld [vmem:[%s0 + $0x10] sm:$0xff]
  %v38 = vld [vmem:[%s0 + $0x18] sm:$0xff]
  %v39 = vld [vmem:[%s0 + $0x20] sm:$0xff]
  %v40 = vld [vmem:[%s0 + $0x28] sm:$0xff]
  %v41 = vld [vmem:[%s0 + $0x30] sm:$0xff]
  %v42 = vld [vmem:[%s0 + $0x38] sm:$0xff]
  %v43 = vpack.c.bf16 %v35, %v35
  %v44 = vpack.c.bf16 %v36, %v36
  %v45 = vpack.c.bf16 %v37, %v37
  %v46 = vpack.c.bf16 %v38, %v38
  %v47 = vpack.c.bf16 %v39, %v39
  %v48 = vpack.c.bf16 %v40, %v40
  %v49 = vpack.c.bf16 %v41, %v41
  %v50 = vpack.c.bf16 %v42, %v42
  %v51 = vld [vmem:[%s1] sm:$0xf]
  %v52 = vld [vmem:[%s1 + $0x4] sm:$0xf]
  %v53 = vld [vmem:[%s1 + $0x8] sm:$0xf]
  %v54 = vld [vmem:[%s1 + $0xc] sm:$0xf]
  %v55 = vld [vmem:[%s1 + $0x10] sm:$0xf]
  %v56 = vld [vmem:[%s1 + $0x14] sm:$0xf]
  %v57 = vld [vmem:[%s1 + $0x18] sm:$0xf]
  %v58 = vld [vmem:[%s1 + $0x1c] sm:$0xf]
  %v59 = vld [vmem:[%s1 + $0x20] sm:$0xf]
  %v60 = vld [vmem:[%s1 + $0x24] sm:$0xf]
  %v61 = vld [vmem:[%s1 + $0x28] sm:$0xf]
  %v62 = vld [vmem:[%s1 + $0x2c] sm:$0xf]
  %v63 = vld [vmem:[%s1 + $0x30] sm:$0xf]
  %v64 = vld [vmem:[%s1 + $0x34] sm:$0xf]
  %v65 = vld [vmem:[%s1 + $0x38] sm:$0xf]
  %v66 = vld [vmem:[%s1 + $0x3c] sm:$0xf]
  %v67 = vld [vmem:[%s1 + $0x40] sm:$0xf]
  %v68 = vld [vmem:[%s1 + $0x44] sm:$0xf]
  %v69 = vld [vmem:[%s1 + $0x48] sm:$0xf]
  %v70 = vld [vmem:[%s1 + $0x4c] sm:$0xf]
  %v71 = vld [vmem:[%s1 + $0x50] sm:$0xf]
  %v72 = vld [vmem:[%s1 + $0x54] sm:$0xf]
  %v73 = vld [vmem:[%s1 + $0x58] sm:$0xf]
  %v74 = vld [vmem:[%s1 + $0x5c] sm:$0xf]
  %v75 = vld [vmem:[%s1 + $0x60] sm:$0xf]
  %v76 = vld [vmem:[%s1 + $0x64] sm:$0xf]
  %v77 = vld [vmem:[%s1 + $0x68] sm:$0xf]
  %v78 = vld [vmem:[%s1 + $0x6c] sm:$0xf]
  %v79 = vld [vmem:[%s1 + $0x70] sm:$0xf]
  %v80 = vld [vmem:[%s1 + $0x74] sm:$0xf]
  %v81 = vld [vmem:[%s1 + $0x78] sm:$0xf]
  %v82 = vld [vmem:[%s1 + $0x7c] sm:$0xf]
  %v83 = vld [vmem:[%s1 + $0x80] sm:$0xf]
  %v84 = vld [vmem:[%s1 + $0x84] sm:$0xf]
  %v85 = vld [vmem:[%s1 + $0x88] sm:$0xf]
  %v86 = vld [vmem:[%s1 + $0x8c] sm:$0xf]
  %v87 = vld [vmem:[%s1 + $0x90] sm:$0xf]
  %v88 = vld [vmem:[%s1 + $0x94] sm:$0xf]
  %v89 = vld [vmem:[%s1 + $0x98] sm:$0xf]
  %v90 = vld [vmem:[%s1 + $0x9c] sm:$0xf]
  %v91 = vld [vmem:[%s1 + $0xa0] sm:$0xf]
  %v92 = vld [vmem:[%s1 + $0xa4] sm:$0xf]
  %v93 = vld [vmem:[%s1 + $0xa8] sm:$0xf]
  %v94 = vld [vmem:[%s1 + $0xac] sm:$0xf]
  %v95 = vld [vmem:[%s1 + $0xb0] sm:$0xf]
  %v96 = vld [vmem:[%s1 + $0xb4] sm:$0xf]
  %v97 = vld [vmem:[%s1 + $0xb8] sm:$0xf]
  %v98 = vld [vmem:[%s1 + $0xbc] sm:$0xf]
  %v99 = vld [vmem:[%s1 + $0xc0] sm:$0xf]
  %v100 = vld [vmem:[%s1 + $0xc4] sm:$0xf]
  %v101 = vld [vmem:[%s1 + $0xc8] sm:$0xf]
  %v102 = vld [vmem:[%s1 + $0xcc] sm:$0xf]
  %v103 = vld [vmem:[%s1 + $0xd0] sm:$0xf]
  %v104 = vld [vmem:[%s1 + $0xd4] sm:$0xf]
  %v105 = vld [vmem:[%s1 + $0xd8] sm:$0xf]
  %v106 = vld [vmem:[%s1 + $0xdc] sm:$0xf]
  %v107 = vld [vmem:[%s1 + $0xe0] sm:$0xf]
  %v108 = vld [vmem:[%s1 + $0xe4] sm:$0xf]
  %v109 = vld [vmem:[%s1 + $0xe8] sm:$0xf]
  %v110 = vld [vmem:[%s1 + $0xec] sm:$0xf]
  %v111 = vld [vmem:[%s1 + $0xf0] sm:$0xf]
  %v112 = vld [vmem:[%s1 + $0xf4] sm:$0xf]
  %v113 = vld [vmem:[%s1 + $0xf8] sm:$0xf]
  %v114 = vld [vmem:[%s1 + $0xfc] sm:$0xf]
  %v115 = vld [vmem:[%s1 + $0x100] sm:$0xf]
  %v116 = vld [vmem:[%s1 + $0x104] sm:$0xf]
  %v117 = vld [vmem:[%s1 + $0x108] sm:$0xf]
  %v118 = vld [vmem:[%s1 + $0x10c] sm:$0xf]
  %v119 = vld [vmem:[%s1 + $0x110] sm:$0xf]
  %v120 = vld [vmem:[%s1 + $0x114] sm:$0xf]
  %v121 = vld [vmem:[%s1 + $0x118] sm:$0xf]
  %v122 = vld [vmem:[%s1 + $0x11c] sm:$0xf]
  %v123 = vld [vmem:[%s1 + $0x120] sm:$0xf]
  %v124 = vld [vmem:[%s1 + $0x124] sm:$0xf]
  %v125 = vld [vmem:[%s1 + $0x128] sm:$0xf]
  %v126 = vld [vmem:[%s1 + $0x12c] sm:$0xf]
  %v127 = vld [vmem:[%s1 + $0x130] sm:$0xf]
  %v128 = vld [vmem:[%s1 + $0x134] sm:$0xf]
  %v129 = vld [vmem:[%s1 + $0x138] sm:$0xf]
  %v130 = vld [vmem:[%s1 + $0x13c] sm:$0xf]
  %v131 = vld [vmem:[%s1 + $0x140] sm:$0xf]
  %v132 = vld [vmem:[%s1 + $0x144] sm:$0xf]
  %v133 = vld [vmem:[%s1 + $0x148] sm:$0xf]
  %v134 = vld [vmem:[%s1 + $0x14c] sm:$0xf]
  %v135 = vld [vmem:[%s1 + $0x150] sm:$0xf]
  %v136 = vld [vmem:[%s1 + $0x154] sm:$0xf]
  %v137 = vld [vmem:[%s1 + $0x158] sm:$0xf]
  %v138 = vld [vmem:[%s1 + $0x15c] sm:$0xf]
  %v139 = vld [vmem:[%s1 + $0x160] sm:$0xf]
  %v140 = vld [vmem:[%s1 + $0x164] sm:$0xf]
  %v141 = vld [vmem:[%s1 + $0x168] sm:$0xf]
  %v142 = vld [vmem:[%s1 + $0x16c] sm:$0xf]
  %v143 = vld [vmem:[%s1 + $0x170] sm:$0xf]
  %v144 = vld [vmem:[%s1 + $0x174] sm:$0xf]
  %v145 = vld [vmem:[%s1 + $0x178] sm:$0xf]
  %v146 = vld [vmem:[%s1 + $0x17c] sm:$0xf]
  %v147 = vld [vmem:[%s1 + $0x180] sm:$0xf]
  %v148 = vld [vmem:[%s1 + $0x184] sm:$0xf]
  %v149 = vld [vmem:[%s1 + $0x188] sm:$0xf]
  %v150 = vld [vmem:[%s1 + $0x18c] sm:$0xf]
  %v151 = vld [vmem:[%s1 + $0x190] sm:$0xf]
  %v152 = vld [vmem:[%s1 + $0x194] sm:$0xf]
  %v153 = vld [vmem:[%s1 + $0x198] sm:$0xf]
  %v154 = vld [vmem:[%s1 + $0x19c] sm:$0xf]
  %v155 = vld [vmem:[%s1 + $0x1a0] sm:$0xf]
  %v156 = vld [vmem:[%s1 + $0x1a4] sm:$0xf]
  %v157 = vld [vmem:[%s1 + $0x1a8] sm:$0xf]
  %v158 = vld [vmem:[%s1 + $0x1ac] sm:$0xf]
  %v159 = vld [vmem:[%s1 + $0x1b0] sm:$0xf]
  %v160 = vld [vmem:[%s1 + $0x1b4] sm:$0xf]
  %v161 = vld [vmem:[%s1 + $0x1b8] sm:$0xf]
  %v162 = vld [vmem:[%s1 + $0x1bc] sm:$0xf]
  %v163 = vld [vmem:[%s1 + $0x1c0] sm:$0xf]
  %v164 = vld [vmem:[%s1 + $0x1c4] sm:$0xf]
  %v165 = vld [vmem:[%s1 + $0x1c8] sm:$0xf]
  %v166 = vld [vmem:[%s1 + $0x1cc] sm:$0xf]
  %v167 = vld [vmem:[%s1 + $0x1d0] sm:$0xf]
  %v168 = vld [vmem:[%s1 + $0x1d4] sm:$0xf]
  %v169 = vld [vmem:[%s1 + $0x1d8] sm:$0xf]
  %v170 = vld [vmem:[%s1 + $0x1dc] sm:$0xf]
  %v171 = vld [vmem:[%s1 + $0x1e0] sm:$0xf]
  %v172 = vld [vmem:[%s1 + $0x1e4] sm:$0xf]
  %v173 = vld [vmem:[%s1 + $0x1e8] sm:$0xf]
  %v174 = vld [vmem:[%s1 + $0x1ec] sm:$0xf]
  %v175 = vld [vmem:[%s1 + $0x1f0] sm:$0xf]
  %v176 = vld [vmem:[%s1 + $0x1f4] sm:$0xf]
  %v177 = vld [vmem:[%s1 + $0x1f8] sm:$0xf]
  %v178 = vld [vmem:[%s1 + $0x1fc] sm:$0xf]
  %v179 = vld [vmem:[%s2] sm:$0x1]
  %v181 = vlaneseq
  %v182 = vshrl.u32 %v181, 7
  %v183 = vsub.s32 0, %v182
  %v184 = vrot.slane %v179, %v183
  %v314 = vunpack.c.l.b16 %v51
  %v315 = vunpack.c.l.b16 %v52
  %v316 = vunpack.c.l.b16 %v53
  %v317 = vunpack.c.l.b16 %v54
  %v318 = vunpack.c.l.b16 %v55
  %v319 = vunpack.c.l.b16 %v56
  %v320 = vunpack.c.l.b16 %v57
  %v321 = vunpack.c.l.b16 %v58
  %v322 = vunpack.c.l.b16 %v59
  %v323 = vunpack.c.l.b16 %v60
  %v324 = vunpack.c.l.b16 %v61
  %v325 = vunpack.c.l.b16 %v62
  %v326 = vunpack.c.l.b16 %v63
  %v327 = vunpack.c.l.b16 %v64
  %v328 = vunpack.c.l.b16 %v65
  %v329 = vunpack.c.l.b16 %v66
  %v330 = vunpack.c.l.b16 %v67
  %v331 = vunpack.c.l.b16 %v68
  %v332 = vunpack.c.l.b16 %v69
  %v333 = vunpack.c.l.b16 %v70
  %v334 = vunpack.c.l.b16 %v71
  %v335 = vunpack.c.l.b16 %v72
  %v336 = vunpack.c.l.b16 %v73
  %v337 = vunpack.c.l.b16 %v74
  %v338 = vunpack.c.l.b16 %v75
  %v339 = vunpack.c.l.b16 %v76
  %v340 = vunpack.c.l.b16 %v77
  %v341 = vunpack.c.l.b16 %v78
  %v342 = vunpack.c.l.b16 %v79
  %v343 = vunpack.c.l.b16 %v80
  %v344 = vunpack.c.l.b16 %v81
  %v345 = vunpack.c.l.b16 %v82
  %v346 = vunpack.c.l.b16 %v83
  %v347 = vunpack.c.l.b16 %v84
  %v348 = vunpack.c.l.b16 %v85
  %v349 = vunpack.c.l.b16 %v86
  %v350 = vunpack.c.l.b16 %v87
  %v351 = vunpack.c.l.b16 %v88
  %v352 = vunpack.c.l.b16 %v89
  %v353 = vunpack.c.l.b16 %v90
  %v354 = vunpack.c.l.b16 %v91
  %v355 = vunpack.c.l.b16 %v92
  %v356 = vunpack.c.l.b16 %v93
  %v357 = vunpack.c.l.b16 %v94
  %v358 = vunpack.c.l.b16 %v95
  %v359 = vunpack.c.l.b16 %v96
  %v360 = vunpack.c.l.b16 %v97
  %v361 = vunpack.c.l.b16 %v98
  %v362 = vunpack.c.l.b16 %v99
  %v363 = vunpack.c.l.b16 %v100
  %v364 = vunpack.c.l.b16 %v101
  %v365 = vunpack.c.l.b16 %v102
  %v366 = vunpack.c.l.b16 %v103
  %v367 = vunpack.c.l.b16 %v104
  %v368 = vunpack.c.l.b16 %v105
  %v369 = vunpack.c.l.b16 %v106
  %v370 = vunpack.c.l.b16 %v107
  %v371 = vunpack.c.l.b16 %v108
  %v372 = vunpack.c.l.b16 %v109
  %v373 = vunpack.c.l.b16 %v110
  %v374 = vunpack.c.l.b16 %v111
  %v375 = vunpack.c.l.b16 %v112
  %v376 = vunpack.c.l.b16 %v113
  %v377 = vunpack.c.l.b16 %v114
  %v378 = vunpack.c.l.b16 %v115
  %v379 = vunpack.c.l.b16 %v116
  %v380 = vunpack.c.l.b16 %v117
  %v381 = vunpack.c.l.b16 %v118
  %v382 = vunpack.c.l.b16 %v119
  %v383 = vunpack.c.l.b16 %v120
  %v384 = vunpack.c.l.b16 %v121
  %v385 = vunpack.c.l.b16 %v122
  %v386 = vunpack.c.l.b16 %v123
  %v387 = vunpack.c.l.b16 %v124
  %v388 = vunpack.c.l.b16 %v125
  %v389 = vunpack.c.l.b16 %v126
  %v390 = vunpack.c.l.b16 %v127
  %v391 = vunpack.c.l.b16 %v128
  %v392 = vunpack.c.l.b16 %v129
  %v393 = vunpack.c.l.b16 %v130
  %v394 = vunpack.c.l.b16 %v131
  %v395 = vunpack.c.l.b16 %v132
  %v396 = vunpack.c.l.b16 %v133
  %v397 = vunpack.c.l.b16 %v134
  %v398 = vunpack.c.l.b16 %v135
  %v399 = vunpack.c.l.b16 %v136
  %v400 = vunpack.c.l.b16 %v137
  %v401 = vunpack.c.l.b16 %v138
  %v402 = vunpack.c.l.b16 %v139
  %v403 = vunpack.c.l.b16 %v140
  %v404 = vunpack.c.l.b16 %v141
  %v405 = vunpack.c.l.b16 %v142
  %v406 = vunpack.c.l.b16 %v143
  %v407 = vunpack.c.l.b16 %v144
  %v408 = vunpack.c.l.b16 %v145
  %v409 = vunpack.c.l.b16 %v146
  %v410 = vunpack.c.l.b16 %v147
  %v411 = vunpack.c.l.b16 %v148
  %v412 = vunpack.c.l.b16 %v149
  %v413 = vunpack.c.l.b16 %v150
  %v414 = vunpack.c.l.b16 %v151
  %v415 = vunpack.c.l.b16 %v152
  %v416 = vunpack.c.l.b16 %v153
  %v417 = vunpack.c.l.b16 %v154
  %v418 = vunpack.c.l.b16 %v155
  %v419 = vunpack.c.l.b16 %v156
  %v420 = vunpack.c.l.b16 %v157
  %v421 = vunpack.c.l.b16 %v158
  %v422 = vunpack.c.l.b16 %v159
  %v423 = vunpack.c.l.b16 %v160
  %v424 = vunpack.c.l.b16 %v161
  %v425 = vunpack.c.l.b16 %v162
  %v426 = vunpack.c.l.b16 %v163
  %v427 = vunpack.c.l.b16 %v164
  %v428 = vunpack.c.l.b16 %v165
  %v429 = vunpack.c.l.b16 %v166
  %v430 = vunpack.c.l.b16 %v167
  %v431 = vunpack.c.l.b16 %v168
  %v432 = vunpack.c.l.b16 %v169
  %v433 = vunpack.c.l.b16 %v170
  %v434 = vunpack.c.l.b16 %v171
  %v435 = vunpack.c.l.b16 %v172
  %v436 = vunpack.c.l.b16 %v173
  %v437 = vunpack.c.l.b16 %v174
  %v438 = vunpack.c.l.b16 %v175
  %v439 = vunpack.c.l.b16 %v176
  %v440 = vunpack.c.l.b16 %v177
  %v441 = vunpack.c.l.b16 %v178
  %v442 = vpack.c.b16 %v315, %v314
  %v443 = vpack.c.b16 %v317, %v316
  %v444 = vpack.c.b16 %v319, %v318
  %v445 = vpack.c.b16 %v321, %v320
  %v446 = vpack.c.b16 %v323, %v322
  %v447 = vpack.c.b16 %v325, %v324
  %v448 = vpack.c.b16 %v327, %v326
  %v449 = vpack.c.b16 %v329, %v328
  %v450 = vpack.c.b16 %v331, %v330
  %v451 = vpack.c.b16 %v333, %v332
  %v452 = vpack.c.b16 %v335, %v334
  %v453 = vpack.c.b16 %v337, %v336
  %v454 = vpack.c.b16 %v339, %v338
  %v455 = vpack.c.b16 %v341, %v340
  %v456 = vpack.c.b16 %v343, %v342
  %v457 = vpack.c.b16 %v345, %v344
  %v458 = vpack.c.b16 %v347, %v346
  %v459 = vpack.c.b16 %v349, %v348
  %v460 = vpack.c.b16 %v351, %v350
  %v461 = vpack.c.b16 %v353, %v352
  %v462 = vpack.c.b16 %v355, %v354
  %v463 = vpack.c.b16 %v357, %v356
  %v464 = vpack.c.b16 %v359, %v358
  %v465 = vpack.c.b16 %v361, %v360
  %v466 = vpack.c.b16 %v363, %v362
  %v467 = vpack.c.b16 %v365, %v364
  %v468 = vpack.c.b16 %v367, %v366
  %v469 = vpack.c.b16 %v369, %v368
  %v470 = vpack.c.b16 %v371, %v370
  %v471 = vpack.c.b16 %v373, %v372
  %v472 = vpack.c.b16 %v375, %v374
  %v473 = vpack.c.b16 %v377, %v376
  %v474 = vpack.c.b16 %v379, %v378
  %v475 = vpack.c.b16 %v381, %v380
  %v476 = vpack.c.b16 %v383, %v382
  %v477 = vpack.c.b16 %v385, %v384
  %v478 = vpack.c.b16 %v387, %v386
  %v479 = vpack.c.b16 %v389, %v388
  %v480 = vpack.c.b16 %v391, %v390
  %v481 = vpack.c.b16 %v393, %v392
  %v482 = vpack.c.b16 %v395, %v394
  %v483 = vpack.c.b16 %v397, %v396
  %v484 = vpack.c.b16 %v399, %v398
  %v485 = vpack.c.b16 %v401, %v400
  %v486 = vpack.c.b16 %v403, %v402
  %v487 = vpack.c.b16 %v405, %v404
  %v488 = vpack.c.b16 %v407, %v406
  %v489 = vpack.c.b16 %v409, %v408
  %v490 = vpack.c.b16 %v411, %v410
  %v491 = vpack.c.b16 %v413, %v412
  %v492 = vpack.c.b16 %v415, %v414
  %v493 = vpack.c.b16 %v417, %v416
  %v494 = vpack.c.b16 %v419, %v418
  %v495 = vpack.c.b16 %v421, %v420
  %v496 = vpack.c.b16 %v423, %v422
  %v497 = vpack.c.b16 %v425, %v424
  %v498 = vpack.c.b16 %v427, %v426
  %v499 = vpack.c.b16 %v429, %v428
  %v500 = vpack.c.b16 %v431, %v430
  %v501 = vpack.c.b16 %v433, %v432
  %v502 = vpack.c.b16 %v435, %v434
  %v503 = vpack.c.b16 %v437, %v436
  %v504 = vpack.c.b16 %v439, %v438
  %v505 = vpack.c.b16 %v441, %v440
  %570 = vmatprep.subr.bf16.mxu0 0
  %571 = vmatpush1.bf16.msra.mxu0 %v442
  %572 = vmatprep.subr.bf16.mxu0 0
  %573 = vmatpush1.bf16.msra.mxu0 %v443
  %574 = vmatprep.subr.bf16.mxu0 0
  %575 = vmatpush1.bf16.msra.mxu0 %v444
  %576 = vmatprep.subr.bf16.mxu0 0
  %577 = vmatpush1.bf16.msra.mxu0 %v445
  %578 = vmatprep.subr.bf16.mxu0 0
  %579 = vmatpush1.bf16.msra.mxu0 %v446
  %580 = vmatprep.subr.bf16.mxu0 0
  %581 = vmatpush1.bf16.msra.mxu0 %v447
  %582 = vmatprep.subr.bf16.mxu0 0
  %583 = vmatpush1.bf16.msra.mxu0 %v448
  %584 = vmatprep.subr.bf16.mxu0 0
  %585 = vmatpush1.bf16.msra.mxu0 %v449
  %586 = vmatprep.subr.bf16.mxu0 0
  %587 = vmatpush1.bf16.msra.mxu0 %v450
  %588 = vmatprep.subr.bf16.mxu0 0
  %589 = vmatpush1.bf16.msra.mxu0 %v451
  %590 = vmatprep.subr.bf16.mxu0 0
  %591 = vmatpush1.bf16.msra.mxu0 %v452
  %592 = vmatprep.subr.bf16.mxu0 0
  %593 = vmatpush1.bf16.msra.mxu0 %v453
  %594 = vmatprep.subr.bf16.mxu0 0
  %595 = vmatpush1.bf16.msra.mxu0 %v454
  %596 = vmatprep.subr.bf16.mxu0 0
  %597 = vmatpush1.bf16.msra.mxu0 %v455
  %598 = vmatprep.subr.bf16.mxu0 0
  %599 = vmatpush1.bf16.msra.mxu0 %v456
  %600 = vmatprep.subr.bf16.mxu0 0
  %601 = vmatpush1.bf16.msra.mxu0 %v457
  %602 = vmatprep.mubr.bf16.mxu0 %v44
  %603 = vmatmul.mubr.bf16.gmra.mrb[0].mxu0 %v43
  %v604 = vpop.f32.mrb[0].mxu0
  %v605 = vadd.f32 %v184, %v604
  %v606 = vpop.f32.mrb[0].mxu0
  %v607 = vpop.f32.mrb[0].mxu0
  %v608 = vpop.f32.mrb[0].mxu0
  %609 = vdwg.mxu0
  %610 = vmatprep.subr.bf16.mxu0 0
  %611 = vmatpush1.bf16.msra.mxu0 %v458
  %612 = vmatprep.subr.bf16.mxu0 0
  %613 = vmatpush1.bf16.msra.mxu0 %v459
  %614 = vmatprep.subr.bf16.mxu0 0
  %615 = vmatpush1.bf16.msra.mxu0 %v460
  %616 = vmatprep.subr.bf16.mxu0 0
  %617 = vmatpush1.bf16.msra.mxu0 %v461
  %618 = vmatprep.subr.bf16.mxu0 0
  %619 = vmatpush1.bf16.msra.mxu0 %v462
  %620 = vmatprep.subr.bf16.mxu0 0
  %621 = vmatpush1.bf16.msra.mxu0 %v463
  %622 = vmatprep.subr.bf16.mxu0 0
  %623 = vmatpush1.bf16.msra.mxu0 %v464
  %624 = vmatprep.subr.bf16.mxu0 0
  %625 = vmatpush1.bf16.msra.mxu0 %v465
  %626 = vmatprep.subr.bf16.mxu0 0
  %627 = vmatpush1.bf16.msra.mxu0 %v466
  %628 = vmatprep.subr.bf16.mxu0 0
  %629 = vmatpush1.bf16.msra.mxu0 %v467
  %630 = vmatprep.subr.bf16.mxu0 0
  %631 = vmatpush1.bf16.msra.mxu0 %v468
  %632 = vmatprep.subr.bf16.mxu0 0
  %633 = vmatpush1.bf16.msra.mxu0 %v469
  %634 = vmatprep.subr.bf16.mxu0 0
  %635 = vmatpush1.bf16.msra.mxu0 %v470
  %636 = vmatprep.subr.bf16.mxu0 0
  %637 = vmatpush1.bf16.msra.mxu0 %v471
  %638 = vmatprep.subr.bf16.mxu0 0
  %639 = vmatpush1.bf16.msra.mxu0 %v472
  %640 = vmatprep.subr.bf16.mxu0 0
  %641 = vmatpush1.bf16.msra.mxu0 %v473
  %642 = vmatprep.mubr.bf16.mxu0 %v46
  %643 = vmatmul.mubr.bf16.gmra.mrb[0].mxu0 %v45
  %v644 = vpop.f32.mrb[0].mxu0
  %v645 = vadd.f32 %v605, %v644
  %v646 = vpop.f32.mrb[0].mxu0
  %v647 = vpop.f32.mrb[0].mxu0
  %v648 = vpop.f32.mrb[0].mxu0
  %649 = vdwg.mxu0
  %650 = vmatprep.subr.bf16.mxu0 0
  %651 = vmatpush1.bf16.msra.mxu0 %v474
  %652 = vmatprep.subr.bf16.mxu0 0
  %653 = vmatpush1.bf16.msra.mxu0 %v475
  %654 = vmatprep.subr.bf16.mxu0 0
  %655 = vmatpush1.bf16.msra.mxu0 %v476
  %656 = vmatprep.subr.bf16.mxu0 0
  %657 = vmatpush1.bf16.msra.mxu0 %v477
  %658 = vmatprep.subr.bf16.mxu0 0
  %659 = vmatpush1.bf16.msra.mxu0 %v478
  %660 = vmatprep.subr.bf16.mxu0 0
  %661 = vmatpush1.bf16.msra.mxu0 %v479
  %662 = vmatprep.subr.bf16.mxu0 0
  %663 = vmatpush1.bf16.msra.mxu0 %v480
  %664 = vmatprep.subr.bf16.mxu0 0
  %665 = vmatpush1.bf16.msra.mxu0 %v481
  %666 = vmatprep.subr.bf16.mxu0 0
  %667 = vmatpush1.bf16.msra.mxu0 %v482
  %668 = vmatprep.subr.bf16.mxu0 0
  %669 = vmatpush1.bf16.msra.mxu0 %v483
  %670 = vmatprep.subr.bf16.mxu0 0
  %671 = vmatpush1.bf16.msra.mxu0 %v484
  %672 = vmatprep.subr.bf16.mxu0 0
  %673 = vmatpush1.bf16.msra.mxu0 %v485
  %674 = vmatprep.subr.bf16.mxu0 0
  %675 = vmatpush1.bf16.msra.mxu0 %v486
  %676 = vmatprep.subr.bf16.mxu0 0
  %677 = vmatpush1.bf16.msra.mxu0 %v487
  %678 = vmatprep.subr.bf16.mxu0 0
  %679 = vmatpush1.bf16.msra.mxu0 %v488
  %680 = vmatprep.subr.bf16.mxu0 0
  %681 = vmatpush1.bf16.msra.mxu0 %v489
  %682 = vmatprep.mubr.bf16.mxu0 %v48
  %683 = vmatmul.mubr.bf16.gmra.mrb[0].mxu0 %v47
  %v684 = vpop.f32.mrb[0].mxu0
  %v685 = vadd.f32 %v645, %v684
  %v686 = vpop.f32.mrb[0].mxu0
  %v687 = vpop.f32.mrb[0].mxu0
  %v688 = vpop.f32.mrb[0].mxu0
  %689 = vdwg.mxu0
  %690 = vmatprep.subr.bf16.mxu0 0
  %691 = vmatpush1.bf16.msra.mxu0 %v490
  %692 = vmatprep.subr.bf16.mxu0 0
  %693 = vmatpush1.bf16.msra.mxu0 %v491
  %694 = vmatprep.subr.bf16.mxu0 0
  %695 = vmatpush1.bf16.msra.mxu0 %v492
  %696 = vmatprep.subr.bf16.mxu0 0
  %697 = vmatpush1.bf16.msra.mxu0 %v493
  %698 = vmatprep.subr.bf16.mxu0 0
  %699 = vmatpush1.bf16.msra.mxu0 %v494
  %700 = vmatprep.subr.bf16.mxu0 0
  %701 = vmatpush1.bf16.msra.mxu0 %v495
  %702 = vmatprep.subr.bf16.mxu0 0
  %703 = vmatpush1.bf16.msra.mxu0 %v496
  %704 = vmatprep.subr.bf16.mxu0 0
  %705 = vmatpush1.bf16.msra.mxu0 %v497
  %706 = vmatprep.subr.bf16.mxu0 0
  %707 = vmatpush1.bf16.msra.mxu0 %v498
  %708 = vmatprep.subr.bf16.mxu0 0
  %709 = vmatpush1.bf16.msra.mxu0 %v499
  %710 = vmatprep.subr.bf16.mxu0 0
  %711 = vmatpush1.bf16.msra.mxu0 %v500
  %712 = vmatprep.subr.bf16.mxu0 0
  %713 = vmatpush1.bf16.msra.mxu0 %v501
  %714 = vmatprep.subr.bf16.mxu0 0
  %715 = vmatpush1.bf16.msra.mxu0 %v502
  %716 = vmatprep.subr.bf16.mxu0 0
  %717 = vmatpush1.bf16.msra.mxu0 %v503
  %718 = vmatprep.subr.bf16.mxu0 0
  %719 = vmatpush1.bf16.msra.mxu0 %v504
  %720 = vmatprep.subr.bf16.mxu0 0
  %721 = vmatpush1.bf16.msra.mxu0 %v505
  %722 = vmatprep.mubr.bf16.mxu0 %v50
  %723 = vmatmul.mubr.bf16.gmra.mrb[0].mxu0 %v49
  %v724 = vpop.f32.mrb[0].mxu0
  %v725 = vadd.f32 %v685, %v724
  %v726 = vpop.f32.mrb[0].mxu0
  %v727 = vpop.f32.mrb[0].mxu0
  %v728 = vpop.f32.mrb[0].mxu0
  %729 = vdwg.mxu0
  %v730 = vmax.f32 %v725, 0.0
  %v731 = vpack.c.bf16 %v730, %v730
  %v732 = vld [vmem:[%s3] sm:$0xf]
  %v733 = vld [vmem:[%s3 + $0x4] sm:$0xf]
  %v734 = vld [vmem:[%s3 + $0x8] sm:$0xf]
  %v735 = vld [vmem:[%s3 + $0xc] sm:$0xf]
  %v736 = vld [vmem:[%s3 + $0x10] sm:$0xf]
  %v737 = vld [vmem:[%s3 + $0x14] sm:$0xf]
  %v738 = vld [vmem:[%s3 + $0x18] sm:$0xf]
  %v739 = vld [vmem:[%s3 + $0x1c] sm:$0xf]
  %v740 = vld [vmem:[%s3 + $0x20] sm:$0xf]
  %v741 = vld [vmem:[%s3 + $0x24] sm:$0xf]
  %v742 = vld [vmem:[%s3 + $0x28] sm:$0xf]
  %v743 = vld [vmem:[%s3 + $0x2c] sm:$0xf]
  %v744 = vld [vmem:[%s3 + $0x30] sm:$0xf]
  %v745 = vld [vmem:[%s3 + $0x34] sm:$0xf]
  %v746 = vld [vmem:[%s3 + $0x38] sm:$0xf]
  %v747 = vld [vmem:[%s3 + $0x3c] sm:$0xf]
  %v748 = vld [vmem:[%s4] sm:$0x1]
  %v750 = vlaneseq
  %v751 = vshrl.u32 %v750, 7
  %v752 = vsub.s32 0, %v751
  %v753 = vrot.slane %v748, %v752
  %v771 = vunpack.c.l.b16 %v732
  %v772 = vunpack.c.l.b16 %v733
  %v773 = vunpack.c.l.b16 %v734
  %v774 = vunpack.c.l.b16 %v735
  %v775 = vunpack.c.l.b16 %v736
  %v776 = vunpack.c.l.b16 %v737
  %v777 = vunpack.c.l.b16 %v738
  %v778 = vunpack.c.l.b16 %v739
  %v779 = vunpack.c.l.b16 %v740
  %v780 = vunpack.c.l.b16 %v741
  %v781 = vunpack.c.l.b16 %v742
  %v782 = vunpack.c.l.b16 %v743
  %v783 = vunpack.c.l.b16 %v744
  %v784 = vunpack.c.l.b16 %v745
  %v785 = vunpack.c.l.b16 %v746
  %v786 = vunpack.c.l.b16 %v747
  %v787 = vpack.c.b16 %v772, %v771
  %v788 = vpack.c.b16 %v774, %v773
  %v789 = vpack.c.b16 %v776, %v775
  %v790 = vpack.c.b16 %v778, %v777
  %v791 = vpack.c.b16 %v780, %v779
  %v792 = vpack.c.b16 %v782, %v781
  %v793 = vpack.c.b16 %v784, %v783
  %v794 = vpack.c.b16 %v786, %v785
  %803 = vmatprep.subr.bf16.mxu0 0
  %804 = vmatpush1.bf16.msra.mxu0 %v787
  %805 = vmatprep.subr.bf16.mxu0 0
  %806 = vmatpush1.bf16.msra.mxu0 %v788
  %807 = vmatprep.subr.bf16.mxu0 0
  %808 = vmatpush1.bf16.msra.mxu0 %v789
  %809 = vmatprep.subr.bf16.mxu0 0
  %810 = vmatpush1.bf16.msra.mxu0 %v790
  %811 = vmatprep.subr.bf16.mxu0 0
  %812 = vmatpush1.bf16.msra.mxu0 %v791
  %813 = vmatprep.subr.bf16.mxu0 0
  %814 = vmatpush1.bf16.msra.mxu0 %v792
  %815 = vmatprep.subr.bf16.mxu0 0
  %816 = vmatpush1.bf16.msra.mxu0 %v793
  %817 = vmatprep.subr.bf16.mxu0 0
  %818 = vmatpush1.bf16.msra.mxu0 %v794
  %819 = vmatprep.subr.bf16.mxu0 0
  %820 = vmatpush1.bf16.msra.mxu0 0
  %821 = vmatprep.subr.bf16.mxu0 0
  %822 = vmatpush1.bf16.msra.mxu0 0
  %823 = vmatprep.subr.bf16.mxu0 0
  %824 = vmatpush1.bf16.msra.mxu0 0
  %825 = vmatprep.subr.bf16.mxu0 0
  %826 = vmatpush1.bf16.msra.mxu0 0
  %827 = vmatprep.subr.bf16.mxu0 0
  %828 = vmatpush1.bf16.msra.mxu0 0
  %829 = vmatprep.subr.bf16.mxu0 0
  %830 = vmatpush1.bf16.msra.mxu0 0
  %831 = vmatprep.subr.bf16.mxu0 0
  %832 = vmatpush1.bf16.msra.mxu0 0
  %833 = vmatprep.subr.bf16.mxu0 0
  %834 = vmatpush1.bf16.msra.mxu0 0
  %835 = vmatprep.mubr.bf16.mxu0 0
  %836 = vmatmul.mubr.bf16.gmra.mrb[0].mxu0 %v731
  %v837 = vpop.f32.mrb[0].mxu0
  %v838 = vadd.f32 %v753, %v837
  %v839 = vpop.f32.mrb[0].mxu0
  %v840 = vpop.f32.mrb[0].mxu0
  %v841 = vpop.f32.mrb[0].mxu0
  %842 = vdwg.mxu0
  %v843 = vlaneseq
  %v844 = vand.u32 %v843, 127
  %vm845 = vcmp.lt.s32.totalorder %v844, 64
  %v846 = vmul.f32 %v838, 0.5
  %v847 = vmul.f32 %v846, 1.442695
  %v848 = vpow.pop %v847
  %v849 = vsel %vm845, %v838, %v848
  %v850 = vpack.c.bf16 %v838, %v838
  %v851 = vld [vmem:[%s5] sm:$0xf]
  %v852 = vld [vmem:[%s5 + $0x4] sm:$0xf]
  %v853 = vld [vmem:[%s5 + $0x8] sm:$0xf]
  %v854 = vld [vmem:[%s5 + $0xc] sm:$0xf]
  %v855 = vld [vmem:[%s5 + $0x10] sm:$0xf]
  %v856 = vld [vmem:[%s5 + $0x14] sm:$0xf]
  %v857 = vld [vmem:[%s5 + $0x18] sm:$0xf]
  %v858 = vld [vmem:[%s5 + $0x1c] sm:$0xf]
  %v859 = vld [vmem:[%s5 + $0x20] sm:$0xf]
  %v860 = vld [vmem:[%s5 + $0x24] sm:$0xf]
  %v861 = vld [vmem:[%s5 + $0x28] sm:$0xf]
  %v862 = vld [vmem:[%s5 + $0x2c] sm:$0xf]
  %v863 = vld [vmem:[%s5 + $0x30] sm:$0xf]
  %v864 = vld [vmem:[%s5 + $0x34] sm:$0xf]
  %v865 = vld [vmem:[%s5 + $0x38] sm:$0xf]
  %v866 = vld [vmem:[%s5 + $0x3c] sm:$0xf]
  %v867 = vld [vmem:[%s6] sm:$0x1]
  %v869 = vlaneseq
  %v870 = vshrl.u32 %v869, 7
  %v871 = vsub.s32 0, %v870
  %v872 = vrot.slane %v867, %v871
  %v890 = vunpack.c.l.b16 %v851
  %v891 = vunpack.c.l.b16 %v852
  %v892 = vunpack.c.l.b16 %v853
  %v893 = vunpack.c.l.b16 %v854
  %v894 = vunpack.c.l.b16 %v855
  %v895 = vunpack.c.l.b16 %v856
  %v896 = vunpack.c.l.b16 %v857
  %v897 = vunpack.c.l.b16 %v858
  %v898 = vunpack.c.l.b16 %v859
  %v899 = vunpack.c.l.b16 %v860
  %v900 = vunpack.c.l.b16 %v861
  %v901 = vunpack.c.l.b16 %v862
  %v902 = vunpack.c.l.b16 %v863
  %v903 = vunpack.c.l.b16 %v864
  %v904 = vunpack.c.l.b16 %v865
  %v905 = vunpack.c.l.b16 %v866
  %v906 = vpack.c.b16 %v891, %v890
  %v907 = vpack.c.b16 %v893, %v892
  %v908 = vpack.c.b16 %v895, %v894
  %v909 = vpack.c.b16 %v897, %v896
  %v910 = vpack.c.b16 %v899, %v898
  %v911 = vpack.c.b16 %v901, %v900
  %v912 = vpack.c.b16 %v903, %v902
  %v913 = vpack.c.b16 %v905, %v904
  %922 = vmatprep.subr.bf16.mxu0 0
  %923 = vmatpush1.bf16.msra.mxu0 %v906
  %924 = vmatprep.subr.bf16.mxu0 0
  %925 = vmatpush1.bf16.msra.mxu0 %v907
  %926 = vmatprep.subr.bf16.mxu0 0
  %927 = vmatpush1.bf16.msra.mxu0 %v908
  %928 = vmatprep.subr.bf16.mxu0 0
  %929 = vmatpush1.bf16.msra.mxu0 %v909
  %930 = vmatprep.subr.bf16.mxu0 0
  %931 = vmatpush1.bf16.msra.mxu0 %v910
  %932 = vmatprep.subr.bf16.mxu0 0
  %933 = vmatpush1.bf16.msra.mxu0 %v911
  %934 = vmatprep.subr.bf16.mxu0 0
  %935 = vmatpush1.bf16.msra.mxu0 %v912
  %936 = vmatprep.subr.bf16.mxu0 0
  %937 = vmatpush1.bf16.msra.mxu0 %v913
  %938 = vmatprep.subr.bf16.mxu0 0
  %939 = vmatpush1.bf16.msra.mxu0 0
  %940 = vmatprep.subr.bf16.mxu0 0
  %941 = vmatpush1.bf16.msra.mxu0 0
  %942 = vmatprep.subr.bf16.mxu0 0
  %943 = vmatpush1.bf16.msra.mxu0 0
  %944 = vmatprep.subr.bf16.mxu0 0
  %945 = vmatpush1.bf16.msra.mxu0 0
  %946 = vmatprep.subr.bf16.mxu0 0
  %947 = vmatpush1.bf16.msra.mxu0 0
  %948 = vmatprep.subr.bf16.mxu0 0
  %949 = vmatpush1.bf16.msra.mxu0 0
  %950 = vmatprep.subr.bf16.mxu0 0
  %951 = vmatpush1.bf16.msra.mxu0 0
  %952 = vmatprep.subr.bf16.mxu0 0
  %953 = vmatpush1.bf16.msra.mxu0 0
  %954 = vmatprep.mubr.bf16.mxu0 0
  %955 = vmatmul.mubr.bf16.gmra.mrb[0].mxu0 %v850
  %v956 = vpop.f32.mrb[0].mxu0
  %v957 = vadd.f32 %v872, %v956
  %v958 = vpop.f32.mrb[0].mxu0
  %v959 = vpop.f32.mrb[0].mxu0
  %v960 = vpop.f32.mrb[0].mxu0
  %961 = vdwg.mxu0
  %v962 = vmax.f32 %v957, 0.0
  %v963 = vpack.c.bf16 %v962, %v962
  %v964 = vld [vmem:[%s7] sm:$0xff]
  %v965 = vld [vmem:[%s7 + $0x8] sm:$0xff]
  %v966 = vld [vmem:[%s7 + $0x10] sm:$0xff]
  %v967 = vld [vmem:[%s7 + $0x18] sm:$0xff]
  %v968 = vld [vmem:[%s7 + $0x20] sm:$0xff]
  %v969 = vld [vmem:[%s7 + $0x28] sm:$0xff]
  %v970 = vld [vmem:[%s7 + $0x30] sm:$0xff]
  %v971 = vld [vmem:[%s7 + $0x38] sm:$0xff]
  %v972 = vld [vmem:[%s7 + $0x40] sm:$0xff]
  %v973 = vld [vmem:[%s7 + $0x48] sm:$0xff]
  %v974 = vld [vmem:[%s7 + $0x50] sm:$0xff]
  %v975 = vld [vmem:[%s7 + $0x58] sm:$0xff]
  %v976 = vld [vmem:[%s7 + $0x60] sm:$0xff]
  %v977 = vld [vmem:[%s7 + $0x68] sm:$0xff]
  %v978 = vld [vmem:[%s7 + $0x70] sm:$0xff]
  %v979 = vld [vmem:[%s7 + $0x78] sm:$0xff]
  %v980 = vld [vmem:[%s7 + $0x80] sm:$0xff]
  %v981 = vld [vmem:[%s7 + $0x88] sm:$0xff]
  %v982 = vld [vmem:[%s7 + $0x90] sm:$0xff]
  %v983 = vld [vmem:[%s7 + $0x98] sm:$0xff]
  %v984 = vld [vmem:[%s7 + $0xa0] sm:$0xff]
  %v985 = vld [vmem:[%s7 + $0xa8] sm:$0xff]
  %v986 = vld [vmem:[%s7 + $0xb0] sm:$0xff]
  %v987 = vld [vmem:[%s7 + $0xb8] sm:$0xff]
  %v988 = vld [vmem:[%s7 + $0xc0] sm:$0xff]
  %v989 = vld [vmem:[%s7 + $0xc8] sm:$0xff]
  %v990 = vld [vmem:[%s7 + $0xd0] sm:$0xff]
  %v991 = vld [vmem:[%s7 + $0xd8] sm:$0xff]
  %v992 = vld [vmem:[%s7 + $0xe0] sm:$0xff]
  %v993 = vld [vmem:[%s7 + $0xe8] sm:$0xff]
  %v994 = vld [vmem:[%s7 + $0xf0] sm:$0xff]
  %v995 = vld [vmem:[%s7 + $0xf8] sm:$0xff]
  %v996 = vld [vmem:[%s7 + $0x100] sm:$0xff]
  %v997 = vld [vmem:[%s7 + $0x108] sm:$0xff]
  %v998 = vld [vmem:[%s7 + $0x110] sm:$0xff]
  %v999 = vld [vmem:[%s7 + $0x118] sm:$0xff]
  %v1000 = vld [vmem:[%s7 + $0x120] sm:$0xff]
  %v1001 = vld [vmem:[%s7 + $0x128] sm:$0xff]
  %v1002 = vld [vmem:[%s7 + $0x130] sm:$0xff]
  %v1003 = vld [vmem:[%s7 + $0x138] sm:$0xff]
  %v1004 = vld [vmem:[%s7 + $0x140] sm:$0xff]
  %v1005 = vld [vmem:[%s7 + $0x148] sm:$0xff]
  %v1006 = vld [vmem:[%s7 + $0x150] sm:$0xff]
  %v1007 = vld [vmem:[%s7 + $0x158] sm:$0xff]
  %v1008 = vld [vmem:[%s7 + $0x160] sm:$0xff]
  %v1009 = vld [vmem:[%s7 + $0x168] sm:$0xff]
  %v1010 = vld [vmem:[%s7 + $0x170] sm:$0xff]
  %v1011 = vld [vmem:[%s7 + $0x178] sm:$0xff]
  %v1012 = vld [vmem:[%s7 + $0x180] sm:$0xff]
  %v1013 = vld [vmem:[%s7 + $0x188] sm:$0xff]
  %v1014 = vld [vmem:[%s7 + $0x190] sm:$0xff]
  %v1015 = vld [vmem:[%s7 + $0x198] sm:$0xff]
  %v1016 = vld [vmem:[%s7 + $0x1a0] sm:$0xff]
  %v1017 = vld [vmem:[%s7 + $0x1a8] sm:$0xff]
  %v1018 = vld [vmem:[%s7 + $0x1b0] sm:$0xff]
  %v1019 = vld [vmem:[%s7 + $0x1b8] sm:$0xff]
  %v1020 = vld [vmem:[%s7 + $0x1c0] sm:$0xff]
  %v1021 = vld [vmem:[%s7 + $0x1c8] sm:$0xff]
  %v1022 = vld [vmem:[%s7 + $0x1d0] sm:$0xff]
  %v1023 = vld [vmem:[%s7 + $0x1d8] sm:$0xff]
  %v1024 = vld [vmem:[%s7 + $0x1e0] sm:$0xff]
  %v1025 = vld [vmem:[%s7 + $0x1e8] sm:$0xff]
  %v1026 = vld [vmem:[%s7 + $0x1f0] sm:$0xff]
  %v1027 = vld [vmem:[%s7 + $0x1f8] sm:$0xff]
  %v1028 = vld [vmem:[%s8] sm:$0xff]
  %v1030 = vlaneseq
  %v1031 = vshrl.u32 %v1030, 7
  %v1032 = vsub.s32 0, %v1031
  %v1033 = vrot.slane %v1028, %v1032
  %v1034 = vlaneseq
  %v1035 = vshrl.u32 %v1034, 7
  %v1036 = vsub.s32 1, %v1035
  %v1037 = vrot.slane %v1028, %v1036
  %v1038 = vlaneseq
  %v1039 = vshrl.u32 %v1038, 7
  %v1040 = vsub.s32 2, %v1039
  %v1041 = vrot.slane %v1028, %v1040
  %v1042 = vlaneseq
  %v1043 = vshrl.u32 %v1042, 7
  %v1044 = vsub.s32 3, %v1043
  %v1045 = vrot.slane %v1028, %v1044
  %v1046 = vlaneseq
  %v1047 = vshrl.u32 %v1046, 7
  %v1048 = vsub.s32 4, %v1047
  %v1049 = vrot.slane %v1028, %v1048
  %v1050 = vlaneseq
  %v1051 = vshrl.u32 %v1050, 7
  %v1052 = vsub.s32 5, %v1051
  %v1053 = vrot.slane %v1028, %v1052
  %v1054 = vlaneseq
  %v1055 = vshrl.u32 %v1054, 7
  %v1056 = vsub.s32 6, %v1055
  %v1057 = vrot.slane %v1028, %v1056
  %v1058 = vlaneseq
  %v1059 = vshrl.u32 %v1058, 7
  %v1060 = vsub.s32 7, %v1059
  %v1061 = vrot.slane %v1028, %v1060
  %v1134 = vunpack.c.l.b16 %v964
  %v1135 = vunpack.c.h.b16 %v964
  %v1136 = vunpack.c.l.b16 %v965
  %v1137 = vunpack.c.h.b16 %v965
  %v1138 = vunpack.c.l.b16 %v966
  %v1139 = vunpack.c.h.b16 %v966
  %v1140 = vunpack.c.l.b16 %v967
  %v1141 = vunpack.c.h.b16 %v967
  %v1142 = vunpack.c.l.b16 %v968
  %v1143 = vunpack.c.h.b16 %v968
  %v1144 = vunpack.c.l.b16 %v969
  %v1145 = vunpack.c.h.b16 %v969
  %v1146 = vunpack.c.l.b16 %v970
  %v1147 = vunpack.c.h.b16 %v970
  %v1148 = vunpack.c.l.b16 %v971
  %v1149 = vunpack.c.h.b16 %v971
  %v1150 = vunpack.c.l.b16 %v972
  %v1151 = vunpack.c.h.b16 %v972
  %v1152 = vunpack.c.l.b16 %v973
  %v1153 = vunpack.c.h.b16 %v973
  %v1154 = vunpack.c.l.b16 %v974
  %v1155 = vunpack.c.h.b16 %v974
  %v1156 = vunpack.c.l.b16 %v975
  %v1157 = vunpack.c.h.b16 %v975
  %v1158 = vunpack.c.l.b16 %v976
  %v1159 = vunpack.c.h.b16 %v976
  %v1160 = vunpack.c.l.b16 %v977
  %v1161 = vunpack.c.h.b16 %v977
  %v1162 = vunpack.c.l.b16 %v978
  %v1163 = vunpack.c.h.b16 %v978
  %v1164 = vunpack.c.l.b16 %v979
  %v1165 = vunpack.c.h.b16 %v979
  %v1166 = vunpack.c.l.b16 %v980
  %v1167 = vunpack.c.h.b16 %v980
  %v1168 = vunpack.c.l.b16 %v981
  %v1169 = vunpack.c.h.b16 %v981
  %v1170 = vunpack.c.l.b16 %v982
  %v1171 = vunpack.c.h.b16 %v982
  %v1172 = vunpack.c.l.b16 %v983
  %v1173 = vunpack.c.h.b16 %v983
  %v1174 = vunpack.c.l.b16 %v984
  %v1175 = vunpack.c.h.b16 %v984
  %v1176 = vunpack.c.l.b16 %v985
  %v1177 = vunpack.c.h.b16 %v985
  %v1178 = vunpack.c.l.b16 %v986
  %v1179 = vunpack.c.h.b16 %v986
  %v1180 = vunpack.c.l.b16 %v987
  %v1181 = vunpack.c.h.b16 %v987
  %v1182 = vunpack.c.l.b16 %v988
  %v1183 = vunpack.c.h.b16 %v988
  %v1184 = vunpack.c.l.b16 %v989
  %v1185 = vunpack.c.h.b16 %v989
  %v1186 = vunpack.c.l.b16 %v990
  %v1187 = vunpack.c.h.b16 %v990
  %v1188 = vunpack.c.l.b16 %v991
  %v1189 = vunpack.c.h.b16 %v991
  %v1190 = vunpack.c.l.b16 %v992
  %v1191 = vunpack.c.h.b16 %v992
  %v1192 = vunpack.c.l.b16 %v993
  %v1193 = vunpack.c.h.b16 %v993
  %v1194 = vunpack.c.l.b16 %v994
  %v1195 = vunpack.c.h.b16 %v994
  %v1196 = vunpack.c.l.b16 %v995
  %v1197 = vunpack.c.h.b16 %v995
  %v1198 = vunpack.c.l.b16 %v996
  %v1199 = vunpack.c.h.b16 %v996
  %v1200 = vunpack.c.l.b16 %v997
  %v1201 = vunpack.c.h.b16 %v997
  %v1202 = vunpack.c.l.b16 %v998
  %v1203 = vunpack.c.h.b16 %v998
  %v1204 = vunpack.c.l.b16 %v999
  %v1205 = vunpack.c.h.b16 %v999
  %v1206 = vunpack.c.l.b16 %v1000
  %v1207 = vunpack.c.h.b16 %v1000
  %v1208 = vunpack.c.l.b16 %v1001
  %v1209 = vunpack.c.h.b16 %v1001
  %v1210 = vunpack.c.l.b16 %v1002
  %v1211 = vunpack.c.h.b16 %v1002
  %v1212 = vunpack.c.l.b16 %v1003
  %v1213 = vunpack.c.h.b16 %v1003
  %v1214 = vunpack.c.l.b16 %v1004
  %v1215 = vunpack.c.h.b16 %v1004
  %v1216 = vunpack.c.l.b16 %v1005
  %v1217 = vunpack.c.h.b16 %v1005
  %v1218 = vunpack.c.l.b16 %v1006
  %v1219 = vunpack.c.h.b16 %v1006
  %v1220 = vunpack.c.l.b16 %v1007
  %v1221 = vunpack.c.h.b16 %v1007
  %v1222 = vunpack.c.l.b16 %v1008
  %v1223 = vunpack.c.h.b16 %v1008
  %v1224 = vunpack.c.l.b16 %v1009
  %v1225 = vunpack.c.h.b16 %v1009
  %v1226 = vunpack.c.l.b16 %v1010
  %v1227 = vunpack.c.h.b16 %v1010
  %v1228 = vunpack.c.l.b16 %v1011
  %v1229 = vunpack.c.h.b16 %v1011
  %v1230 = vunpack.c.l.b16 %v1012
  %v1231 = vunpack.c.h.b16 %v1012
  %v1232 = vunpack.c.l.b16 %v1013
  %v1233 = vunpack.c.h.b16 %v1013
  %v1234 = vunpack.c.l.b16 %v1014
  %v1235 = vunpack.c.h.b16 %v1014
  %v1236 = vunpack.c.l.b16 %v1015
  %v1237 = vunpack.c.h.b16 %v1015
  %v1238 = vunpack.c.l.b16 %v1016
  %v1239 = vunpack.c.h.b16 %v1016
  %v1240 = vunpack.c.l.b16 %v1017
  %v1241 = vunpack.c.h.b16 %v1017
  %v1242 = vunpack.c.l.b16 %v1018
  %v1243 = vunpack.c.h.b16 %v1018
  %v1244 = vunpack.c.l.b16 %v1019
  %v1245 = vunpack.c.h.b16 %v1019
  %v1246 = vunpack.c.l.b16 %v1020
  %v1247 = vunpack.c.h.b16 %v1020
  %v1248 = vunpack.c.l.b16 %v1021
  %v1249 = vunpack.c.h.b16 %v1021
  %v1250 = vunpack.c.l.b16 %v1022
  %v1251 = vunpack.c.h.b16 %v1022
  %v1252 = vunpack.c.l.b16 %v1023
  %v1253 = vunpack.c.h.b16 %v1023
  %v1254 = vunpack.c.l.b16 %v1024
  %v1255 = vunpack.c.h.b16 %v1024
  %v1256 = vunpack.c.l.b16 %v1025
  %v1257 = vunpack.c.h.b16 %v1025
  %v1258 = vunpack.c.l.b16 %v1026
  %v1259 = vunpack.c.h.b16 %v1026
  %v1260 = vunpack.c.l.b16 %v1027
  %v1261 = vunpack.c.h.b16 %v1027
  %v1262 = vpack.c.b16 %v1142, %v1134
  %v1263 = vpack.c.b16 %v1143, %v1135
  %v1264 = vpack.c.b16 %v1144, %v1136
  %v1265 = vpack.c.b16 %v1145, %v1137
  %v1266 = vpack.c.b16 %v1146, %v1138
  %v1267 = vpack.c.b16 %v1147, %v1139
  %v1268 = vpack.c.b16 %v1148, %v1140
  %v1269 = vpack.c.b16 %v1149, %v1141
  %v1270 = vpack.c.b16 %v1158, %v1150
  %v1271 = vpack.c.b16 %v1159, %v1151
  %v1272 = vpack.c.b16 %v1160, %v1152
  %v1273 = vpack.c.b16 %v1161, %v1153
  %v1274 = vpack.c.b16 %v1162, %v1154
  %v1275 = vpack.c.b16 %v1163, %v1155
  %v1276 = vpack.c.b16 %v1164, %v1156
  %v1277 = vpack.c.b16 %v1165, %v1157
  %v1278 = vpack.c.b16 %v1174, %v1166
  %v1279 = vpack.c.b16 %v1175, %v1167
  %v1280 = vpack.c.b16 %v1176, %v1168
  %v1281 = vpack.c.b16 %v1177, %v1169
  %v1282 = vpack.c.b16 %v1178, %v1170
  %v1283 = vpack.c.b16 %v1179, %v1171
  %v1284 = vpack.c.b16 %v1180, %v1172
  %v1285 = vpack.c.b16 %v1181, %v1173
  %v1286 = vpack.c.b16 %v1190, %v1182
  %v1287 = vpack.c.b16 %v1191, %v1183
  %v1288 = vpack.c.b16 %v1192, %v1184
  %v1289 = vpack.c.b16 %v1193, %v1185
  %v1290 = vpack.c.b16 %v1194, %v1186
  %v1291 = vpack.c.b16 %v1195, %v1187
  %v1292 = vpack.c.b16 %v1196, %v1188
  %v1293 = vpack.c.b16 %v1197, %v1189
  %v1294 = vpack.c.b16 %v1206, %v1198
  %v1295 = vpack.c.b16 %v1207, %v1199
  %v1296 = vpack.c.b16 %v1208, %v1200
  %v1297 = vpack.c.b16 %v1209, %v1201
  %v1298 = vpack.c.b16 %v1210, %v1202
  %v1299 = vpack.c.b16 %v1211, %v1203
  %v1300 = vpack.c.b16 %v1212, %v1204
  %v1301 = vpack.c.b16 %v1213, %v1205
  %v1302 = vpack.c.b16 %v1222, %v1214
  %v1303 = vpack.c.b16 %v1223, %v1215
  %v1304 = vpack.c.b16 %v1224, %v1216
  %v1305 = vpack.c.b16 %v1225, %v1217
  %v1306 = vpack.c.b16 %v1226, %v1218
  %v1307 = vpack.c.b16 %v1227, %v1219
  %v1308 = vpack.c.b16 %v1228, %v1220
  %v1309 = vpack.c.b16 %v1229, %v1221
  %v1310 = vpack.c.b16 %v1238, %v1230
  %v1311 = vpack.c.b16 %v1239, %v1231
  %v1312 = vpack.c.b16 %v1240, %v1232
  %v1313 = vpack.c.b16 %v1241, %v1233
  %v1314 = vpack.c.b16 %v1242, %v1234
  %v1315 = vpack.c.b16 %v1243, %v1235
  %v1316 = vpack.c.b16 %v1244, %v1236
  %v1317 = vpack.c.b16 %v1245, %v1237
  %v1318 = vpack.c.b16 %v1254, %v1246
  %v1319 = vpack.c.b16 %v1255, %v1247
  %v1320 = vpack.c.b16 %v1256, %v1248
  %v1321 = vpack.c.b16 %v1257, %v1249
  %v1322 = vpack.c.b16 %v1258, %v1250
  %v1323 = vpack.c.b16 %v1259, %v1251
  %v1324 = vpack.c.b16 %v1260, %v1252
  %v1325 = vpack.c.b16 %v1261, %v1253
  %1390 = vmatprep.subr.bf16.mxu0 %v1263
  %1391 = vmatpush1.bf16.msra.mxu0 %v1262
  %1392 = vmatprep.subr.bf16.mxu0 %v1271
  %1393 = vmatpush1.bf16.msra.mxu0 %v1270
  %1394 = vmatprep.subr.bf16.mxu0 %v1279
  %1395 = vmatpush1.bf16.msra.mxu0 %v1278
  %1396 = vmatprep.subr.bf16.mxu0 %v1287
  %1397 = vmatpush1.bf16.msra.mxu0 %v1286
  %1398 = vmatprep.subr.bf16.mxu0 %v1295
  %1399 = vmatpush1.bf16.msra.mxu0 %v1294
  %1400 = vmatprep.subr.bf16.mxu0 %v1303
  %1401 = vmatpush1.bf16.msra.mxu0 %v1302
  %1402 = vmatprep.subr.bf16.mxu0 %v1311
  %1403 = vmatpush1.bf16.msra.mxu0 %v1310
  %1404 = vmatprep.subr.bf16.mxu0 %v1319
  %1405 = vmatpush1.bf16.msra.mxu0 %v1318
  %1406 = vmatprep.subr.bf16.mxu0 0
  %1407 = vmatpush1.bf16.msra.mxu0 0
  %1408 = vmatprep.subr.bf16.mxu0 0
  %1409 = vmatpush1.bf16.msra.mxu0 0
  %1410 = vmatprep.subr.bf16.mxu0 0
  %1411 = vmatpush1.bf16.msra.mxu0 0
  %1412 = vmatprep.subr.bf16.mxu0 0
  %1413 = vmatpush1.bf16.msra.mxu0 0
  %1414 = vmatprep.subr.bf16.mxu0 0
  %1415 = vmatpush1.bf16.msra.mxu0 0
  %1416 = vmatprep.subr.bf16.mxu0 0
  %1417 = vmatpush1.bf16.msra.mxu0 0
  %1418 = vmatprep.subr.bf16.mxu0 0
  %1419 = vmatpush1.bf16.msra.mxu0 0
  %1420 = vmatprep.subr.bf16.mxu0 0
  %1421 = vmatpush1.bf16.msra.mxu0 0
  %1422 = vmatprep.mubr.bf16.mxu0 0
  %1423 = vmatmul.mubr.bf16.gmra.mrb[0].mxu0 %v963
  %v1424 = vpop.f32.mrb[0].mxu0
  %v1425 = vadd.f32 %v1033, %v1424
  %v1426 = vpop.f32.mrb[0].mxu0
  %v1427 = vadd.f32 %v1037, %v1426
  %v1428 = vpop.f32.mrb[0].mxu0
  %v1429 = vpop.f32.mrb[0].mxu0
  %1430 = vdwg.mxu0
  %1431 = vmatprep.subr.bf16.mxu0 %v1265
  %1432 = vmatpush1.bf16.msra.mxu0 %v1264
  %1433 = vmatprep.subr.bf16.mxu0 %v1273
  %1434 = vmatpush1.bf16.msra.mxu0 %v1272
  %1435 = vmatprep.subr.bf16.mxu0 %v1281
  %1436 = vmatpush1.bf16.msra.mxu0 %v1280
  %1437 = vmatprep.subr.bf16.mxu0 %v1289
  %1438 = vmatpush1.bf16.msra.mxu0 %v1288
  %1439 = vmatprep.subr.bf16.mxu0 %v1297
  %1440 = vmatpush1.bf16.msra.mxu0 %v1296
  %1441 = vmatprep.subr.bf16.mxu0 %v1305
  %1442 = vmatpush1.bf16.msra.mxu0 %v1304
  %1443 = vmatprep.subr.bf16.mxu0 %v1313
  %1444 = vmatpush1.bf16.msra.mxu0 %v1312
  %1445 = vmatprep.subr.bf16.mxu0 %v1321
  %1446 = vmatpush1.bf16.msra.mxu0 %v1320
  %1447 = vmatprep.subr.bf16.mxu0 0
  %1448 = vmatpush1.bf16.msra.mxu0 0
  %1449 = vmatprep.subr.bf16.mxu0 0
  %1450 = vmatpush1.bf16.msra.mxu0 0
  %1451 = vmatprep.subr.bf16.mxu0 0
  %1452 = vmatpush1.bf16.msra.mxu0 0
  %1453 = vmatprep.subr.bf16.mxu0 0
  %1454 = vmatpush1.bf16.msra.mxu0 0
  %1455 = vmatprep.subr.bf16.mxu0 0
  %1456 = vmatpush1.bf16.msra.mxu0 0
  %1457 = vmatprep.subr.bf16.mxu0 0
  %1458 = vmatpush1.bf16.msra.mxu0 0
  %1459 = vmatprep.subr.bf16.mxu0 0
  %1460 = vmatpush1.bf16.msra.mxu0 0
  %1461 = vmatprep.subr.bf16.mxu0 0
  %1462 = vmatpush1.bf16.msra.mxu0 0
  %1463 = vmatprep.mubr.bf16.mxu0 0
  %1464 = vmatmul.mubr.bf16.gmra.mrb[0].mxu0 %v963
  %v1465 = vpop.f32.mrb[0].mxu0
  %v1466 = vadd.f32 %v1041, %v1465
  %v1467 = vpop.f32.mrb[0].mxu0
  %v1468 = vadd.f32 %v1045, %v1467
  %v1469 = vpop.f32.mrb[0].mxu0
  %v1470 = vpop.f32.mrb[0].mxu0
  %1471 = vdwg.mxu0
  %1472 = vmatprep.subr.bf16.mxu0 %v1267
  %1473 = vmatpush1.bf16.msra.mxu0 %v1266
  %1474 = vmatprep.subr.bf16.mxu0 %v1275
  %1475 = vmatpush1.bf16.msra.mxu0 %v1274
  %1476 = vmatprep.subr.bf16.mxu0 %v1283
  %1477 = vmatpush1.bf16.msra.mxu0 %v1282
  %1478 = vmatprep.subr.bf16.mxu0 %v1291
  %1479 = vmatpush1.bf16.msra.mxu0 %v1290
  %1480 = vmatprep.subr.bf16.mxu0 %v1299
  %1481 = vmatpush1.bf16.msra.mxu0 %v1298
  %1482 = vmatprep.subr.bf16.mxu0 %v1307
  %1483 = vmatpush1.bf16.msra.mxu0 %v1306
  %1484 = vmatprep.subr.bf16.mxu0 %v1315
  %1485 = vmatpush1.bf16.msra.mxu0 %v1314
  %1486 = vmatprep.subr.bf16.mxu0 %v1323
  %1487 = vmatpush1.bf16.msra.mxu0 %v1322
  %1488 = vmatprep.subr.bf16.mxu0 0
  %1489 = vmatpush1.bf16.msra.mxu0 0
  %1490 = vmatprep.subr.bf16.mxu0 0
  %1491 = vmatpush1.bf16.msra.mxu0 0
  %1492 = vmatprep.subr.bf16.mxu0 0
  %1493 = vmatpush1.bf16.msra.mxu0 0
  %1494 = vmatprep.subr.bf16.mxu0 0
  %1495 = vmatpush1.bf16.msra.mxu0 0
  %1496 = vmatprep.subr.bf16.mxu0 0
  %1497 = vmatpush1.bf16.msra.mxu0 0
  %1498 = vmatprep.subr.bf16.mxu0 0
  %1499 = vmatpush1.bf16.msra.mxu0 0
  %1500 = vmatprep.subr.bf16.mxu0 0
  %1501 = vmatpush1.bf16.msra.mxu0 0
  %1502 = vmatprep.subr.bf16.mxu0 0
  %1503 = vmatpush1.bf16.msra.mxu0 0
  %1504 = vmatprep.mubr.bf16.mxu0 0
  %1505 = vmatmul.mubr.bf16.gmra.mrb[0].mxu0 %v963
  %v1506 = vpop.f32.mrb[0].mxu0
  %v1507 = vadd.f32 %v1049, %v1506
  %v1508 = vpop.f32.mrb[0].mxu0
  %v1509 = vadd.f32 %v1053, %v1508
  %v1510 = vpop.f32.mrb[0].mxu0
  %v1511 = vpop.f32.mrb[0].mxu0
  %1512 = vdwg.mxu0
  %1513 = vmatprep.subr.bf16.mxu0 %v1269
  %1514 = vmatpush1.bf16.msra.mxu0 %v1268
  %1515 = vmatprep.subr.bf16.mxu0 %v1277
  %1516 = vmatpush1.bf16.msra.mxu0 %v1276
  %1517 = vmatprep.subr.bf16.mxu0 %v1285
  %1518 = vmatpush1.bf16.msra.mxu0 %v1284
  %1519 = vmatprep.subr.bf16.mxu0 %v1293
  %1520 = vmatpush1.bf16.msra.mxu0 %v1292
  %1521 = vmatprep.subr.bf16.mxu0 %v1301
  %1522 = vmatpush1.bf16.msra.mxu0 %v1300
  %1523 = vmatprep.subr.bf16.mxu0 %v1309
  %1524 = vmatpush1.bf16.msra.mxu0 %v1308
  %1525 = vmatprep.subr.bf16.mxu0 %v1317
  %1526 = vmatpush1.bf16.msra.mxu0 %v1316
  %1527 = vmatprep.subr.bf16.mxu0 %v1325
  %1528 = vmatpush1.bf16.msra.mxu0 %v1324
  %1529 = vmatprep.subr.bf16.mxu0 0
  %1530 = vmatpush1.bf16.msra.mxu0 0
  %1531 = vmatprep.subr.bf16.mxu0 0
  %1532 = vmatpush1.bf16.msra.mxu0 0
  %1533 = vmatprep.subr.bf16.mxu0 0
  %1534 = vmatpush1.bf16.msra.mxu0 0
  %1535 = vmatprep.subr.bf16.mxu0 0
  %1536 = vmatpush1.bf16.msra.mxu0 0
  %1537 = vmatprep.subr.bf16.mxu0 0
  %1538 = vmatpush1.bf16.msra.mxu0 0
  %1539 = vmatprep.subr.bf16.mxu0 0
  %1540 = vmatpush1.bf16.msra.mxu0 0
  %1541 = vmatprep.subr.bf16.mxu0 0
  %1542 = vmatpush1.bf16.msra.mxu0 0
  %1543 = vmatprep.subr.bf16.mxu0 0
  %1544 = vmatpush1.bf16.msra.mxu0 0
  %1545 = vmatprep.mubr.bf16.mxu0 0
  %1546 = vmatmul.mubr.bf16.gmra.mrb[0].mxu0 %v963
  %v1547 = vpop.f32.mrb[0].mxu0
  %v1548 = vadd.f32 %v1057, %v1547
  %v1549 = vpop.f32.mrb[0].mxu0
  %v1550 = vadd.f32 %v1061, %v1549
  %v1551 = vpop.f32.mrb[0].mxu0
  %v1552 = vpop.f32.mrb[0].mxu0
  %1553 = vdwg.mxu0
  %v1554 = vxor.u32 %v1425, 2147483648
  %v1555 = vxor.u32 %v1427, 2147483648
  %v1556 = vxor.u32 %v1466, 2147483648
  %v1557 = vxor.u32 %v1468, 2147483648
  %v1558 = vxor.u32 %v1507, 2147483648
  %v1559 = vxor.u32 %v1509, 2147483648
  %v1560 = vxor.u32 %v1548, 2147483648
  %v1561 = vxor.u32 %v1550, 2147483648
  %v1562 = vmul.f32 %v1554, 1.442695
  %v1563 = vpow.pop %v1562
  %v1564 = vmul.f32 %v1555, 1.442695
  %v1565 = vpow.pop %v1564
  %v1566 = vmul.f32 %v1556, 1.442695
  %v1567 = vpow.pop %v1566
  %v1568 = vmul.f32 %v1557, 1.442695
  %v1569 = vpow.pop %v1568
  %v1570 = vmul.f32 %v1558, 1.442695
  %v1571 = vpow.pop %v1570
  %v1572 = vmul.f32 %v1559, 1.442695
  %v1573 = vpow.pop %v1572
  %v1574 = vmul.f32 %v1560, 1.442695
  %v1575 = vpow.pop %v1574
  %v1576 = vmul.f32 %v1561, 1.442695
  %v1577 = vpow.pop %v1576
  %v1578 = vadd.f32 %v1563, 1.0
  %v1579 = vadd.f32 %v1565, 1.0
  %v1580 = vadd.f32 %v1567, 1.0
  %v1581 = vadd.f32 %v1569, 1.0
  %v1582 = vadd.f32 %v1571, 1.0
  %v1583 = vadd.f32 %v1573, 1.0
  %v1584 = vadd.f32 %v1575, 1.0
  %v1585 = vadd.f32 %v1577, 1.0
  %v1586 = vrcp.pop %v1578
  %v1587 = vmul.f32 1.0, %v1586
  %v1588 = vrcp.pop %v1579
  %v1589 = vmul.f32 1.0, %v1588
  %v1590 = vrcp.pop %v1580
  %v1591 = vmul.f32 1.0, %v1590
  %v1592 = vrcp.pop %v1581
  %v1593 = vmul.f32 1.0, %v1592
  %v1594 = vrcp.pop %v1582
  %v1595 = vmul.f32 1.0, %v1594
  %v1596 = vrcp.pop %v1583
  %v1597 = vmul.f32 1.0, %v1596
  %v1598 = vrcp.pop %v1584
  %v1599 = vmul.f32 1.0, %v1598
  %v1600 = vrcp.pop %v1585
  %v1601 = vmul.f32 1.0, %v1600
  %1602 = vst [vmem:[%s9] sm:$0xff] %v1587
  %1603 = vst [vmem:[%s9 + $0x8] sm:$0xff] %v1589
  %1604 = vst [vmem:[%s9 + $0x10] sm:$0xff] %v1591
  %1605 = vst [vmem:[%s9 + $0x18] sm:$0xff] %v1593
  %1606 = vst [vmem:[%s9 + $0x20] sm:$0xff] %v1595
  %1607 = vst [vmem:[%s9 + $0x28] sm:$0xff] %v1597
  %1608 = vst [vmem:[%s9 + $0x30] sm:$0xff] %v1599
  %1609 = vst [vmem:[%s9 + $0x38] sm:$0xff] %v1601
  %1610 = vst [vmem:[%s10] sm:$0xff] %v849
  // Predicated region
  $region38: #{simple_autoencoder_forward.1} parent=0 // pred_check
    _
  $region39: #{simple_autoencoder_forward.1} parent=0 // pred_check_branch
    %1612 = sbr.rel (0) target = $region41
  $region40: #{simple_autoencoder_forward.1} parent=0 // pred_region
    _
  $region41: #{simple_autoencoder_forward.1} parent=0 // pred_fallthru
    _
  // Predicated region
  $region42: #{simple_autoencoder_forward.1} parent=0 // pred_check
    _
  $region43: #{simple_autoencoder_forward.1} parent=0 // pred_check_branch
    %1614 = sbr.rel (0) target = $region45
  $region44: #{simple_autoencoder_forward.1} parent=0 // pred_region
    _
  $region45: #{simple_autoencoder_forward.1} parent=0 // pred_fallthru
    _
  // Predicated region
  $region46: #{simple_autoencoder_forward.1} parent=0 // pred_check
    _
  $region47: #{simple_autoencoder_forward.1} parent=0 // pred_check_branch
    %1616 = sbr.rel (0) target = $region49
  $region48: #{simple_autoencoder_forward.1} parent=0 // pred_region
    _
  $region49: #{simple_autoencoder_forward.1} parent=0 // pred_fallthru
    _
  // Predicated region
  $region50: #{simple_autoencoder_forward.1} parent=0 // pred_check
    _
  $region51: #{simple_autoencoder_forward.1} parent=0 // pred_check_branch
    %1618 = sbr.rel (0) target = $region53
  $region52: #{simple_autoencoder_forward.1} parent=0 // pred_region
    _
  $region53: #{simple_autoencoder_forward.1} parent=0 // pred_fallthru
    _

</llo_original>
